<compile_context>
chip_gen: v7x
topology: tpu7x:2x2x1
jax: 0.10.0
libtpu: 0.0.40
codegen_flags: <defaults>
</compile_context>

<pallas_src>
import jax
import jax.numpy as jnp
import numpy as np
from jax import lax
from jax.experimental import pallas as pl
from jax.experimental.pallas import tpu as pltpu


def make_lstm_kernel(T: int, B: int, H: int):
    """Build the single-invocation LSTM + FC kernel for static (T, B, H)."""

    def lstm_kernel(x_ref, wih_ref, whh_ref, b_ref, wfc_ref, bfc_ref,
                    y_ref, gx_scr):
        # 1) One-shot non-recurrent input projection for all timesteps:
        #    (T*B, I) @ (I, 4H) + bias  ->  VMEM scratch (T*B, 4H), f32.
        gx_scr[...] = (
            jnp.dot(x_ref[...], wih_ref[...],
                    preferred_element_type=jnp.float32)
            + b_ref[...])

        # 2) Recurrence: unrolled in-kernel loop; h/c carried as values.
        #    Per step: one bf16 MXU matmul (f32 accumulate) + gate math.
        #    PyTorch gate order: [i, f, g, o].
        def step(t, carry):
            h, c = carry
            row0 = pl.multiple_of(t * B, B)          # sublane-aligned (B == 8)
            gates = (gx_scr[pl.ds(row0, B), :]
                     + jnp.dot(h.astype(jnp.bfloat16), whh_ref[...],
                               preferred_element_type=jnp.float32))
            i_g = jax.nn.sigmoid(gates[:, 0 * H:1 * H])
            f_g = jax.nn.sigmoid(gates[:, 1 * H:2 * H])
            g_g = jnp.tanh(gates[:, 2 * H:3 * H])
            o_g = jax.nn.sigmoid(gates[:, 3 * H:4 * H])
            c_new = f_g * c + i_g * g_g
            h_new = o_g * jnp.tanh(c_new)
            return (h_new, c_new)

        h0 = jnp.zeros((B, H), jnp.float32)
        c0 = jnp.zeros((B, H), jnp.float32)
        h_last, _ = lax.fori_loop(0, T, step, (h0, c0), unroll=True)

        # 3) Final FC (H -> 1): VPU multiply + lane reduction (avoids an
        #    N=1 MXU matmul); scalar bias read from SMEM.
        y_ref[...] = (jnp.sum(h_last * wfc_ref[...], axis=-1, keepdims=True)
                      + bfc_ref[0, 0])

    return lstm_kernel


def lstm_forward_pallas(x, params):
    """x: (T, B, I) float32 -> (B, 1) float32."""
    T, B, I = x.shape
    H = params["weight_hh"].shape[1]

    # Wrapper-side layout plumbing / weight prep.
    x2d = x.reshape(T * B, I).astype(jnp.float32)           # (T*B, I)
    wih_t = params["weight_ih"].T.astype(jnp.float32)       # (I, 4H), one-shot
    whh_t = params["weight_hh"].T.astype(jnp.bfloat16)      # (H, 4H), MXU bf16
    bias = (params["bias_ih"] + params["bias_hh"]).reshape(1, 4 * H)
    wfc_row = params["fc_w"].reshape(1, H).astype(jnp.float32)
    bfc = params["fc_b"].reshape(1, 1).astype(jnp.float32)  # scalar -> SMEM

    vmem = pltpu.MemorySpace.VMEM
    smem = pltpu.MemorySpace.SMEM

    return pl.pallas_call(
        make_lstm_kernel(T, B, H),
        out_shape=jax.ShapeDtypeStruct((B, 1), jnp.float32),
        in_specs=[
            pl.BlockSpec(memory_space=vmem),   # x2d
            pl.BlockSpec(memory_space=vmem),   # W_ih^T (f32)
            pl.BlockSpec(memory_space=vmem),   # W_hh^T (bf16)
            pl.BlockSpec(memory_space=vmem),   # gate bias (1, 4H)
            pl.BlockSpec(memory_space=vmem),   # fc weight row (1, H)
            pl.BlockSpec(memory_space=smem),   # fc bias scalar (1, 1)
        ],
        out_specs=pl.BlockSpec(memory_space=vmem),
        scratch_shapes=[pltpu.VMEM((T * B, 4 * H), jnp.float32)],  # gates_x
    )(x2d, wih_t, whh_t, bias, wfc_row, bfc)


def lstm_forward_ref(x, params):
    """Pure-JAX f32 reference (matches PyTorch nn.LSTM + nn.Linear semantics)."""
    T, B, I = x.shape
    H = params["weight_hh"].shape[1]
    wih_t = params["weight_ih"].T
    whh_t = params["weight_hh"].T
    bias = params["bias_ih"] + params["bias_hh"]

    def step(carry, x_t):
        h, c = carry
        gates = x_t @ wih_t + h @ whh_t + bias
        i_g = jax.nn.sigmoid(gates[:, 0 * H:1 * H])
        f_g = jax.nn.sigmoid(gates[:, 1 * H:2 * H])
        g_g = jnp.tanh(gates[:, 2 * H:3 * H])
        o_g = jax.nn.sigmoid(gates[:, 3 * H:4 * H])
        c = f_g * c + i_g * g_g
        h = o_g * jnp.tanh(c)
        return (h, c), h

    h0 = jnp.zeros((B, H), jnp.float32)
    c0 = jnp.zeros((B, H), jnp.float32)
    (h_last, _), _ = lax.scan(step, (h0, c0), x)
    return h_last @ params["fc_w"].T + params["fc_b"]


def init_params(key, input_size, hidden_size):
    """Deterministic init mirroring PyTorch default U(-1/sqrt(H), 1/sqrt(H))."""
    k = 1.0 / np.sqrt(hidden_size)
    keys = jax.random.split(key, 6)
    H, I = hidden_size, input_size
    return {
        "weight_ih": jax.random.uniform(keys[0], (4 * H, I), jnp.float32, -k, k),
        "weight_hh": jax.random.uniform(keys[1], (4 * H, H), jnp.float32, -k, k),
        "bias_ih": jax.random.uniform(keys[2], (4 * H,), jnp.float32, -k, k),
        "bias_hh": jax.random.uniform(keys[3], (4 * H,), jnp.float32, -k, k),
        "fc_w": jax.random.uniform(keys[4], (1, H), jnp.float32, -k, k),
        "fc_b": jax.random.uniform(keys[5], (1,), jnp.float32, -k, k),
    }


if __name__ == "__main__":
    SEQ, BATCH, INPUT, HIDDEN = 8, 8, 6, 128   # small synthetic shapes

    key = jax.random.PRNGKey(0)
    kx, kp = jax.random.split(key)
    x = jax.random.normal(kx, (SEQ, BATCH, INPUT), jnp.float32)
    params = init_params(kp, INPUT, HIDDEN)

    y = jax.block_until_ready(lstm_forward_pallas(x, params))
    y_ref = jax.block_until_ready(lstm_forward_ref(x, params))

    # Looser tolerance than the pure-f32 version: the recurrent matmul uses
    # bf16 operands (f32 accumulation) on the MXU per the perf review.
    np.testing.assert_allclose(np.asarray(y), np.asarray(y_ref),
                               rtol=5e-2, atol=2e-2)
    assert y.shape == (BATCH, 1)
    print("KERNEL_OK")
</pallas_src>

<mosaic_0001>
module attributes {stable_mosaic.version = 11 : i64} {
  func.func @lstm_kernel(%arg0: memref<64x6xf32, #tpu.memory_space<vmem>>, %arg1: memref<6x512xf32, #tpu.memory_space<vmem>>, %arg2: memref<128x512xbf16, #tpu.memory_space<vmem>>, %arg3: memref<1x512xf32, #tpu.memory_space<vmem>>, %arg4: memref<1x128xf32, #tpu.memory_space<vmem>>, %arg5: memref<1x1xf32, #tpu.memory_space<smem>>, %arg6: memref<8x1xf32, #tpu.memory_space<vmem>>, %arg7: memref<64x512xf32, #tpu.memory_space<vmem>>) attributes {dimension_semantics = [], scalar_prefetch = 0 : i64, scratch_operands = 1 : i64, tpu.core_type = #tpu.core_type<tc>} {
    %c0 = arith.constant 0 : index
    %c0_0 = arith.constant 0 : index
    %0 = vector.load %arg0[%c0, %c0_0] : memref<64x6xf32, #tpu.memory_space<vmem>>, vector<64x6xf32>
    %c0_1 = arith.constant 0 : index
    %c0_2 = arith.constant 0 : index
    %1 = vector.load %arg1[%c0_1, %c0_2] : memref<6x512xf32, #tpu.memory_space<vmem>>, vector<6x512xf32>
    %cst = arith.constant dense<0.000000e+00> : vector<64x512xf32>
    %2 = tpu.matmul %0, %1, %cst {dimension_numbers = #tpu.dot_dimension_numbers<[1], [0], [0], [1], [0, 0, 1, 1], [], []>} : vector<64x6xf32>, vector<6x512xf32>, vector<64x512xf32> -> vector<64x512xf32>
    %c0_3 = arith.constant 0 : index
    %c0_4 = arith.constant 0 : index
    %3 = vector.load %arg3[%c0_3, %c0_4] : memref<1x512xf32, #tpu.memory_space<vmem>>, vector<1x512xf32>
    %4 = vector.broadcast %3 : vector<1x512xf32> to vector<64x512xf32>
    %5 = arith.addf %2, %4 : vector<64x512xf32>
    %c0_5 = arith.constant 0 : index
    %c0_6 = arith.constant 0 : index
    %6 = vector.load %arg7[%c0_5, %c0_6] : memref<64x512xf32, #tpu.memory_space<vmem>>, vector<64x512xf32>
    tpu.vector_store %arg7[%c0_5, %c0_6], %5 {strides = array<i32>} : memref<64x512xf32, #tpu.memory_space<vmem>>, vector<64x512xf32>,
    %cst_7 = arith.constant 0.000000e+00 : f32
    %7 = vector.broadcast %cst_7 : f32 to vector<8x128xf32>
    %cst_8 = arith.constant 0.000000e+00 : f32
    %8 = vector.broadcast %cst_8 : f32 to vector<8x128xf32>
    %c0_i32 = arith.constant 0 : i32
    %c8_i32 = arith.constant 8 : i32
    %9 = arith.muli %c0_i32, %c8_i32 : i32
    %10 = tpu.assume_multiple %9, 8 : i32
    %11 = arith.index_cast %10 : i32 to index
    %c0_9 = arith.constant 0 : index
    %12 = vector.load %arg7[%11, %c0_9] : memref<64x512xf32, #tpu.memory_space<vmem>>, vector<8x512xf32>
    %13 = arith.truncf %7 : vector<8x128xf32> to vector<8x128xbf16>
    %c0_10 = arith.constant 0 : index
    %c0_11 = arith.constant 0 : index
    %14 = vector.load %arg2[%c0_10, %c0_11] : memref<128x512xbf16, #tpu.memory_space<vmem>>, vector<128x512xbf16>
    %cst_12 = arith.constant dense<0.000000e+00> : vector<8x512xf32>
    %15 = tpu.matmul %13, %14, %cst_12 {dimension_numbers = #tpu.dot_dimension_numbers<[1], [0], [0], [1], [0, 0, 1, 1], [], []>} : vector<8x128xbf16>, vector<128x512xbf16>, vector<8x512xf32> -> vector<8x512xf32>
    %16 = arith.addf %12, %15 : vector<8x512xf32>
    %17 = vector.extract_strided_slice %16 {offsets = [0, 0], sizes = [8, 128], strides = [1, 1]} : vector<8x512xf32> to vector<8x128xf32>
    %18 = arith.negf %17 : vector<8x128xf32>
    %19 = math.exp %18 : vector<8x128xf32>
    %cst_13 = arith.constant 1.000000e+00 : f32
    %20 = vector.broadcast %cst_13 : f32 to vector<8x128xf32>
    %21 = arith.addf %20, %19 : vector<8x128xf32>
    %22 = arith.divf %20, %21 : vector<8x128xf32>
    %23 = vector.extract_strided_slice %16 {offsets = [0, 128], sizes = [8, 128], strides = [1, 1]} : vector<8x512xf32> to vector<8x128xf32>
    %24 = arith.negf %23 : vector<8x128xf32>
    %25 = math.exp %24 : vector<8x128xf32>
    %cst_14 = arith.constant 1.000000e+00 : f32
    %26 = vector.broadcast %cst_14 : f32 to vector<8x128xf32>
    %27 = arith.addf %26, %25 : vector<8x128xf32>
    %28 = arith.divf %26, %27 : vector<8x128xf32>
    %29 = vector.extract_strided_slice %16 {offsets = [0, 256], sizes = [8, 128], strides = [1, 1]} : vector<8x512xf32> to vector<8x128xf32>
    %30 = math.tanh %29 : vector<8x128xf32>
    %31 = vector.extract_strided_slice %16 {offsets = [0, 384], sizes = [8, 128], strides = [1, 1]} : vector<8x512xf32> to vector<8x128xf32>
    %32 = arith.negf %31 : vector<8x128xf32>
    %33 = math.exp %32 : vector<8x128xf32>
    %cst_15 = arith.constant 1.000000e+00 : f32
    %34 = vector.broadcast %cst_15 : f32 to vector<8x128xf32>
    %35 = arith.addf %34, %33 : vector<8x128xf32>
    %36 = arith.divf %34, %35 : vector<8x128xf32>
    %37 = arith.mulf %28, %8 : vector<8x128xf32>
    %38 = arith.mulf %22, %30 : vector<8x128xf32>
    %39 = arith.addf %37, %38 : vector<8x128xf32>
    %40 = math.tanh %39 : vector<8x128xf32>
    %41 = arith.mulf %36, %40 : vector<8x128xf32>
    %c1_i32 = arith.constant 1 : i32
    %c8_i32_16 = arith.constant 8 : i32
    %42 = arith.muli %c1_i32, %c8_i32_16 : i32
    %43 = tpu.assume_multiple %42, 8 : i32
    %44 = arith.index_cast %43 : i32 to index
    %c0_17 = arith.constant 0 : index
    %45 = vector.load %arg7[%44, %c0_17] : memref<64x512xf32, #tpu.memory_space<vmem>>, vector<8x512xf32>
    %46 = arith.truncf %41 : vector<8x128xf32> to vector<8x128xbf16>
    %c0_18 = arith.constant 0 : index
    %c0_19 = arith.constant 0 : index
    %47 = vector.load %arg2[%c0_18, %c0_19] : memref<128x512xbf16, #tpu.memory_space<vmem>>, vector<128x512xbf16>
    %cst_20 = arith.constant dense<0.000000e+00> : vector<8x512xf32>
    %48 = tpu.matmul %46, %47, %cst_20 {dimension_numbers = #tpu.dot_dimension_numbers<[1], [0], [0], [1], [0, 0, 1, 1], [], []>} : vector<8x128xbf16>, vector<128x512xbf16>, vector<8x512xf32> -> vector<8x512xf32>
    %49 = arith.addf %45, %48 : vector<8x512xf32>
    %50 = vector.extract_strided_slice %49 {offsets = [0, 0], sizes = [8, 128], strides = [1, 1]} : vector<8x512xf32> to vector<8x128xf32>
    %51 = arith.negf %50 : vector<8x128xf32>
    %52 = math.exp %51 : vector<8x128xf32>
    %cst_21 = arith.constant 1.000000e+00 : f32
    %53 = vector.broadcast %cst_21 : f32 to vector<8x128xf32>
    %54 = arith.addf %53, %52 : vector<8x128xf32>
    %55 = arith.divf %53, %54 : vector<8x128xf32>
    %56 = vector.extract_strided_slice %49 {offsets = [0, 128], sizes = [8, 128], strides = [1, 1]} : vector<8x512xf32> to vector<8x128xf32>
    %57 = arith.negf %56 : vector<8x128xf32>
    %58 = math.exp %57 : vector<8x128xf32>
    %cst_22 = arith.constant 1.000000e+00 : f32
    %59 = vector.broadcast %cst_22 : f32 to vector<8x128xf32>
    %60 = arith.addf %59, %58 : vector<8x128xf32>
    %61 = arith.divf %59, %60 : vector<8x128xf32>
    %62 = vector.extract_strided_slice %49 {offsets = [0, 256], sizes = [8, 128], strides = [1, 1]} : vector<8x512xf32> to vector<8x128xf32>
    %63 = math.tanh %62 : vector<8x128xf32>
    %64 = vector.extract_strided_slice %49 {offsets = [0, 384], sizes = [8, 128], strides = [1, 1]} : vector<8x512xf32> to vector<8x128xf32>
    %65 = arith.negf %64 : vector<8x128xf32>
    %66 = math.exp %65 : vector<8x128xf32>
    %cst_23 = arith.constant 1.000000e+00 : f32
    %67 = vector.broadcast %cst_23 : f32 to vector<8x128xf32>
    %68 = arith.addf %67, %66 : vector<8x128xf32>
    %69 = arith.divf %67, %68 : vector<8x128xf32>
    %70 = arith.mulf %61, %39 : vector<8x128xf32>
    %71 = arith.mulf %55, %63 : vector<8x128xf32>
    %72 = arith.addf %70, %71 : vector<8x128xf32>
    %73 = math.tanh %72 : vector<8x128xf32>
    %74 = arith.mulf %69, %73 : vector<8x128xf32>
    %c2_i32 = arith.constant 2 : i32
    %c8_i32_24 = arith.constant 8 : i32
    %75 = arith.muli %c2_i32, %c8_i32_24 : i32
    %76 = tpu.assume_multiple %75, 8 : i32
    %77 = arith.index_cast %76 : i32 to index
    %c0_25 = arith.constant 0 : index
    %78 = vector.load %arg7[%77, %c0_25] : memref<64x512xf32, #tpu.memory_space<vmem>>, vector<8x512xf32>
    %79 = arith.truncf %74 : vector<8x128xf32> to vector<8x128xbf16>
    %c0_26 = arith.constant 0 : index
    %c0_27 = arith.constant 0 : index
    %80 = vector.load %arg2[%c0_26, %c0_27] : memref<128x512xbf16, #tpu.memory_space<vmem>>, vector<128x512xbf16>
    %cst_28 = arith.constant dense<0.000000e+00> : vector<8x512xf32>
    %81 = tpu.matmul %79, %80, %cst_28 {dimension_numbers = #tpu.dot_dimension_numbers<[1], [0], [0], [1], [0, 0, 1, 1], [], []>} : vector<8x128xbf16>, vector<128x512xbf16>, vector<8x512xf32> -> vector<8x512xf32>
    %82 = arith.addf %78, %81 : vector<8x512xf32>
    %83 = vector.extract_strided_slice %82 {offsets = [0, 0], sizes = [8, 128], strides = [1, 1]} : vector<8x512xf32> to vector<8x128xf32>
    %84 = arith.negf %83 : vector<8x128xf32>
    %85 = math.exp %84 : vector<8x128xf32>
    %cst_29 = arith.constant 1.000000e+00 : f32
    %86 = vector.broadcast %cst_29 : f32 to vector<8x128xf32>
    %87 = arith.addf %86, %85 : vector<8x128xf32>
    %88 = arith.divf %86, %87 : vector<8x128xf32>
    %89 = vector.extract_strided_slice %82 {offsets = [0, 128], sizes = [8, 128], strides = [1, 1]} : vector<8x512xf32> to vector<8x128xf32>
    %90 = arith.negf %89 : vector<8x128xf32>
    %91 = math.exp %90 : vector<8x128xf32>
    %cst_30 = arith.constant 1.000000e+00 : f32
    %92 = vector.broadcast %cst_30 : f32 to vector<8x128xf32>
    %93 = arith.addf %92, %91 : vector<8x128xf32>
    %94 = arith.divf %92, %93 : vector<8x128xf32>
    %95 = vector.extract_strided_slice %82 {offsets = [0, 256], sizes = [8, 128], strides = [1, 1]} : vector<8x512xf32> to vector<8x128xf32>
    %96 = math.tanh %95 : vector<8x128xf32>
    %97 = vector.extract_strided_slice %82 {offsets = [0, 384], sizes = [8, 128], strides = [1, 1]} : vector<8x512xf32> to vector<8x128xf32>
    %98 = arith.negf %97 : vector<8x128xf32>
    %99 = math.exp %98 : vector<8x128xf32>
    %cst_31 = arith.constant 1.000000e+00 : f32
    %100 = vector.broadcast %cst_31 : f32 to vector<8x128xf32>
    %101 = arith.addf %100, %99 : vector<8x128xf32>
    %102 = arith.divf %100, %101 : vector<8x128xf32>
    %103 = arith.mulf %94, %72 : vector<8x128xf32>
    %104 = arith.mulf %88, %96 : vector<8x128xf32>
    %105 = arith.addf %103, %104 : vector<8x128xf32>
    %106 = math.tanh %105 : vector<8x128xf32>
    %107 = arith.mulf %102, %106 : vector<8x128xf32>
    %c3_i32 = arith.constant 3 : i32
    %c8_i32_32 = arith.constant 8 : i32
    %108 = arith.muli %c3_i32, %c8_i32_32 : i32
    %109 = tpu.assume_multiple %108, 8 : i32
    %110 = arith.index_cast %109 : i32 to index
    %c0_33 = arith.constant 0 : index
    %111 = vector.load %arg7[%110, %c0_33] : memref<64x512xf32, #tpu.memory_space<vmem>>, vector<8x512xf32>
    %112 = arith.truncf %107 : vector<8x128xf32> to vector<8x128xbf16>
    %c0_34 = arith.constant 0 : index
    %c0_35 = arith.constant 0 : index
    %113 = vector.load %arg2[%c0_34, %c0_35] : memref<128x512xbf16, #tpu.memory_space<vmem>>, vector<128x512xbf16>
    %cst_36 = arith.constant dense<0.000000e+00> : vector<8x512xf32>
    %114 = tpu.matmul %112, %113, %cst_36 {dimension_numbers = #tpu.dot_dimension_numbers<[1], [0], [0], [1], [0, 0, 1, 1], [], []>} : vector<8x128xbf16>, vector<128x512xbf16>, vector<8x512xf32> -> vector<8x512xf32>
    %115 = arith.addf %111, %114 : vector<8x512xf32>
    %116 = vector.extract_strided_slice %115 {offsets = [0, 0], sizes = [8, 128], strides = [1, 1]} : vector<8x512xf32> to vector<8x128xf32>
    %117 = arith.negf %116 : vector<8x128xf32>
    %118 = math.exp %117 : vector<8x128xf32>
    %cst_37 = arith.constant 1.000000e+00 : f32
    %119 = vector.broadcast %cst_37 : f32 to vector<8x128xf32>
    %120 = arith.addf %119, %118 : vector<8x128xf32>
    %121 = arith.divf %119, %120 : vector<8x128xf32>
    %122 = vector.extract_strided_slice %115 {offsets = [0, 128], sizes = [8, 128], strides = [1, 1]} : vector<8x512xf32> to vector<8x128xf32>
    %123 = arith.negf %122 : vector<8x128xf32>
    %124 = math.exp %123 : vector<8x128xf32>
    %cst_38 = arith.constant 1.000000e+00 : f32
    %125 = vector.broadcast %cst_38 : f32 to vector<8x128xf32>
    %126 = arith.addf %125, %124 : vector<8x128xf32>
    %127 = arith.divf %125, %126 : vector<8x128xf32>
    %128 = vector.extract_strided_slice %115 {offsets = [0, 256], sizes = [8, 128], strides = [1, 1]} : vector<8x512xf32> to vector<8x128xf32>
    %129 = math.tanh %128 : vector<8x128xf32>
    %130 = vector.extract_strided_slice %115 {offsets = [0, 384], sizes = [8, 128], strides = [1, 1]} : vector<8x512xf32> to vector<8x128xf32>
    %131 = arith.negf %130 : vector<8x128xf32>
    %132 = math.exp %131 : vector<8x128xf32>
    %cst_39 = arith.constant 1.000000e+00 : f32
    %133 = vector.broadcast %cst_39 : f32 to vector<8x128xf32>
    %134 = arith.addf %133, %132 : vector<8x128xf32>
    %135 = arith.divf %133, %134 : vector<8x128xf32>
    %136 = arith.mulf %127, %105 : vector<8x128xf32>
    %137 = arith.mulf %121, %129 : vector<8x128xf32>
    %138 = arith.addf %136, %137 : vector<8x128xf32>
    %139 = math.tanh %138 : vector<8x128xf32>
    %140 = arith.mulf %135, %139 : vector<8x128xf32>
    %c4_i32 = arith.constant 4 : i32
    %c8_i32_40 = arith.constant 8 : i32
    %141 = arith.muli %c4_i32, %c8_i32_40 : i32
    %142 = tpu.assume_multiple %141, 8 : i32
    %143 = arith.index_cast %142 : i32 to index
    %c0_41 = arith.constant 0 : index
    %144 = vector.load %arg7[%143, %c0_41] : memref<64x512xf32, #tpu.memory_space<vmem>>, vector<8x512xf32>
    %145 = arith.truncf %140 : vector<8x128xf32> to vector<8x128xbf16>
    %c0_42 = arith.constant 0 : index
    %c0_43 = arith.constant 0 : index
    %146 = vector.load %arg2[%c0_42, %c0_43] : memref<128x512xbf16, #tpu.memory_space<vmem>>, vector<128x512xbf16>
    %cst_44 = arith.constant dense<0.000000e+00> : vector<8x512xf32>
    %147 = tpu.matmul %145, %146, %cst_44 {dimension_numbers = #tpu.dot_dimension_numbers<[1], [0], [0], [1], [0, 0, 1, 1], [], []>} : vector<8x128xbf16>, vector<128x512xbf16>, vector<8x512xf32> -> vector<8x512xf32>
    %148 = arith.addf %144, %147 : vector<8x512xf32>
    %149 = vector.extract_strided_slice %148 {offsets = [0, 0], sizes = [8, 128], strides = [1, 1]} : vector<8x512xf32> to vector<8x128xf32>
    %150 = arith.negf %149 : vector<8x128xf32>
    %151 = math.exp %150 : vector<8x128xf32>
    %cst_45 = arith.constant 1.000000e+00 : f32
    %152 = vector.broadcast %cst_45 : f32 to vector<8x128xf32>
    %153 = arith.addf %152, %151 : vector<8x128xf32>
    %154 = arith.divf %152, %153 : vector<8x128xf32>
    %155 = vector.extract_strided_slice %148 {offsets = [0, 128], sizes = [8, 128], strides = [1, 1]} : vector<8x512xf32> to vector<8x128xf32>
    %156 = arith.negf %155 : vector<8x128xf32>
    %157 = math.exp %156 : vector<8x128xf32>
    %cst_46 = arith.constant 1.000000e+00 : f32
    %158 = vector.broadcast %cst_46 : f32 to vector<8x128xf32>
    %159 = arith.addf %158, %157 : vector<8x128xf32>
    %160 = arith.divf %158, %159 : vector<8x128xf32>
    %161 = vector.extract_strided_slice %148 {offsets = [0, 256], sizes = [8, 128], strides = [1, 1]} : vector<8x512xf32> to vector<8x128xf32>
    %162 = math.tanh %161 : vector<8x128xf32>
    %163 = vector.extract_strided_slice %148 {offsets = [0, 384], sizes = [8, 128], strides = [1, 1]} : vector<8x512xf32> to vector<8x128xf32>
    %164 = arith.negf %163 : vector<8x128xf32>
    %165 = math.exp %164 : vector<8x128xf32>
    %cst_47 = arith.constant 1.000000e+00 : f32
    %166 = vector.broadcast %cst_47 : f32 to vector<8x128xf32>
    %167 = arith.addf %166, %165 : vector<8x128xf32>
    %168 = arith.divf %166, %167 : vector<8x128xf32>
    %169 = arith.mulf %160, %138 : vector<8x128xf32>
    %170 = arith.mulf %154, %162 : vector<8x128xf32>
    %171 = arith.addf %169, %170 : vector<8x128xf32>
    %172 = math.tanh %171 : vector<8x128xf32>
    %173 = arith.mulf %168, %172 : vector<8x128xf32>
    %c5_i32 = arith.constant 5 : i32
    %c8_i32_48 = arith.constant 8 : i32
    %174 = arith.muli %c5_i32, %c8_i32_48 : i32
    %175 = tpu.assume_multiple %174, 8 : i32
    %176 = arith.index_cast %175 : i32 to index
    %c0_49 = arith.constant 0 : index
    %177 = vector.load %arg7[%176, %c0_49] : memref<64x512xf32, #tpu.memory_space<vmem>>, vector<8x512xf32>
    %178 = arith.truncf %173 : vector<8x128xf32> to vector<8x128xbf16>
    %c0_50 = arith.constant 0 : index
    %c0_51 = arith.constant 0 : index
    %179 = vector.load %arg2[%c0_50, %c0_51] : memref<128x512xbf16, #tpu.memory_space<vmem>>, vector<128x512xbf16>
    %cst_52 = arith.constant dense<0.000000e+00> : vector<8x512xf32>
    %180 = tpu.matmul %178, %179, %cst_52 {dimension_numbers = #tpu.dot_dimension_numbers<[1], [0], [0], [1], [0, 0, 1, 1], [], []>} : vector<8x128xbf16>, vector<128x512xbf16>, vector<8x512xf32> -> vector<8x512xf32>
    %181 = arith.addf %177, %180 : vector<8x512xf32>
    %182 = vector.extract_strided_slice %181 {offsets = [0, 0], sizes = [8, 128], strides = [1, 1]} : vector<8x512xf32> to vector<8x128xf32>
    %183 = arith.negf %182 : vector<8x128xf32>
    %184 = math.exp %183 : vector<8x128xf32>
    %cst_53 = arith.constant 1.000000e+00 : f32
    %185 = vector.broadcast %cst_53 : f32 to vector<8x128xf32>
    %186 = arith.addf %185, %184 : vector<8x128xf32>
    %187 = arith.divf %185, %186 : vector<8x128xf32>
    %188 = vector.extract_strided_slice %181 {offsets = [0, 128], sizes = [8, 128], strides = [1, 1]} : vector<8x512xf32> to vector<8x128xf32>
    %189 = arith.negf %188 : vector<8x128xf32>
    %190 = math.exp %189 : vector<8x128xf32>
    %cst_54 = arith.constant 1.000000e+00 : f32
    %191 = vector.broadcast %cst_54 : f32 to vector<8x128xf32>
    %192 = arith.addf %191, %190 : vector<8x128xf32>
    %193 = arith.divf %191, %192 : vector<8x128xf32>
    %194 = vector.extract_strided_slice %181 {offsets = [0, 256], sizes = [8, 128], strides = [1, 1]} : vector<8x512xf32> to vector<8x128xf32>
    %195 = math.tanh %194 : vector<8x128xf32>
    %196 = vector.extract_strided_slice %181 {offsets = [0, 384], sizes = [8, 128], strides = [1, 1]} : vector<8x512xf32> to vector<8x128xf32>
    %197 = arith.negf %196 : vector<8x128xf32>
    %198 = math.exp %197 : vector<8x128xf32>
    %cst_55 = arith.constant 1.000000e+00 : f32
    %199 = vector.broadcast %cst_55 : f32 to vector<8x128xf32>
    %200 = arith.addf %199, %198 : vector<8x128xf32>
    %201 = arith.divf %199, %200 : vector<8x128xf32>
    %202 = arith.mulf %193, %171 : vector<8x128xf32>
    %203 = arith.mulf %187, %195 : vector<8x128xf32>
    %204 = arith.addf %202, %203 : vector<8x128xf32>
    %205 = math.tanh %204 : vector<8x128xf32>
    %206 = arith.mulf %201, %205 : vector<8x128xf32>
    %c6_i32 = arith.constant 6 : i32
    %c8_i32_56 = arith.constant 8 : i32
    %207 = arith.muli %c6_i32, %c8_i32_56 : i32
    %208 = tpu.assume_multiple %207, 8 : i32
    %209 = arith.index_cast %208 : i32 to index
    %c0_57 = arith.constant 0 : index
    %210 = vector.load %arg7[%209, %c0_57] : memref<64x512xf32, #tpu.memory_space<vmem>>, vector<8x512xf32>
    %211 = arith.truncf %206 : vector<8x128xf32> to vector<8x128xbf16>
    %c0_58 = arith.constant 0 : index
    %c0_59 = arith.constant 0 : index
    %212 = vector.load %arg2[%c0_58, %c0_59] : memref<128x512xbf16, #tpu.memory_space<vmem>>, vector<128x512xbf16>
    %cst_60 = arith.constant dense<0.000000e+00> : vector<8x512xf32>
    %213 = tpu.matmul %211, %212, %cst_60 {dimension_numbers = #tpu.dot_dimension_numbers<[1], [0], [0], [1], [0, 0, 1, 1], [], []>} : vector<8x128xbf16>, vector<128x512xbf16>, vector<8x512xf32> -> vector<8x512xf32>
    %214 = arith.addf %210, %213 : vector<8x512xf32>
    %215 = vector.extract_strided_slice %214 {offsets = [0, 0], sizes = [8, 128], strides = [1, 1]} : vector<8x512xf32> to vector<8x128xf32>
    %216 = arith.negf %215 : vector<8x128xf32>
    %217 = math.exp %216 : vector<8x128xf32>
    %cst_61 = arith.constant 1.000000e+00 : f32
    %218 = vector.broadcast %cst_61 : f32 to vector<8x128xf32>
    %219 = arith.addf %218, %217 : vector<8x128xf32>
    %220 = arith.divf %218, %219 : vector<8x128xf32>
    %221 = vector.extract_strided_slice %214 {offsets = [0, 128], sizes = [8, 128], strides = [1, 1]} : vector<8x512xf32> to vector<8x128xf32>
    %222 = arith.negf %221 : vector<8x128xf32>
    %223 = math.exp %222 : vector<8x128xf32>
    %cst_62 = arith.constant 1.000000e+00 : f32
    %224 = vector.broadcast %cst_62 : f32 to vector<8x128xf32>
    %225 = arith.addf %224, %223 : vector<8x128xf32>
    %226 = arith.divf %224, %225 : vector<8x128xf32>
    %227 = vector.extract_strided_slice %214 {offsets = [0, 256], sizes = [8, 128], strides = [1, 1]} : vector<8x512xf32> to vector<8x128xf32>
    %228 = math.tanh %227 : vector<8x128xf32>
    %229 = vector.extract_strided_slice %214 {offsets = [0, 384], sizes = [8, 128], strides = [1, 1]} : vector<8x512xf32> to vector<8x128xf32>
    %230 = arith.negf %229 : vector<8x128xf32>
    %231 = math.exp %230 : vector<8x128xf32>
    %cst_63 = arith.constant 1.000000e+00 : f32
    %232 = vector.broadcast %cst_63 : f32 to vector<8x128xf32>
    %233 = arith.addf %232, %231 : vector<8x128xf32>
    %234 = arith.divf %232, %233 : vector<8x128xf32>
    %235 = arith.mulf %226, %204 : vector<8x128xf32>
    %236 = arith.mulf %220, %228 : vector<8x128xf32>
    %237 = arith.addf %235, %236 : vector<8x128xf32>
    %238 = math.tanh %237 : vector<8x128xf32>
    %239 = arith.mulf %234, %238 : vector<8x128xf32>
    %c7_i32 = arith.constant 7 : i32
    %c8_i32_64 = arith.constant 8 : i32
    %240 = arith.muli %c7_i32, %c8_i32_64 : i32
    %241 = tpu.assume_multiple %240, 8 : i32
    %242 = arith.index_cast %241 : i32 to index
    %c0_65 = arith.constant 0 : index
    %243 = vector.load %arg7[%242, %c0_65] : memref<64x512xf32, #tpu.memory_space<vmem>>, vector<8x512xf32>
    %244 = arith.truncf %239 : vector<8x128xf32> to vector<8x128xbf16>
    %c0_66 = arith.constant 0 : index
    %c0_67 = arith.constant 0 : index
    %245 = vector.load %arg2[%c0_66, %c0_67] : memref<128x512xbf16, #tpu.memory_space<vmem>>, vector<128x512xbf16>
    %cst_68 = arith.constant dense<0.000000e+00> : vector<8x512xf32>
    %246 = tpu.matmul %244, %245, %cst_68 {dimension_numbers = #tpu.dot_dimension_numbers<[1], [0], [0], [1], [0, 0, 1, 1], [], []>} : vector<8x128xbf16>, vector<128x512xbf16>, vector<8x512xf32> -> vector<8x512xf32>
    %247 = arith.addf %243, %246 : vector<8x512xf32>
    %248 = vector.extract_strided_slice %247 {offsets = [0, 0], sizes = [8, 128], strides = [1, 1]} : vector<8x512xf32> to vector<8x128xf32>
    %249 = arith.negf %248 : vector<8x128xf32>
    %250 = math.exp %249 : vector<8x128xf32>
    %cst_69 = arith.constant 1.000000e+00 : f32
    %251 = vector.broadcast %cst_69 : f32 to vector<8x128xf32>
    %252 = arith.addf %251, %250 : vector<8x128xf32>
    %253 = arith.divf %251, %252 : vector<8x128xf32>
    %254 = vector.extract_strided_slice %247 {offsets = [0, 128], sizes = [8, 128], strides = [1, 1]} : vector<8x512xf32> to vector<8x128xf32>
    %255 = arith.negf %254 : vector<8x128xf32>
    %256 = math.exp %255 : vector<8x128xf32>
    %cst_70 = arith.constant 1.000000e+00 : f32
    %257 = vector.broadcast %cst_70 : f32 to vector<8x128xf32>
    %258 = arith.addf %257, %256 : vector<8x128xf32>
    %259 = arith.divf %257, %258 : vector<8x128xf32>
    %260 = vector.extract_strided_slice %247 {offsets = [0, 256], sizes = [8, 128], strides = [1, 1]} : vector<8x512xf32> to vector<8x128xf32>
    %261 = math.tanh %260 : vector<8x128xf32>
    %262 = vector.extract_strided_slice %247 {offsets = [0, 384], sizes = [8, 128], strides = [1, 1]} : vector<8x512xf32> to vector<8x128xf32>
    %263 = arith.negf %262 : vector<8x128xf32>
    %264 = math.exp %263 : vector<8x128xf32>
    %cst_71 = arith.constant 1.000000e+00 : f32
    %265 = vector.broadcast %cst_71 : f32 to vector<8x128xf32>
    %266 = arith.addf %265, %264 : vector<8x128xf32>
    %267 = arith.divf %265, %266 : vector<8x128xf32>
    %268 = arith.mulf %259, %237 : vector<8x128xf32>
    %269 = arith.mulf %253, %261 : vector<8x128xf32>
    %270 = arith.addf %268, %269 : vector<8x128xf32>
    %271 = math.tanh %270 : vector<8x128xf32>
    %272 = arith.mulf %267, %271 : vector<8x128xf32>
    %c8_i32_72 = arith.constant 8 : i32
    %c0_73 = arith.constant 0 : index
    %c0_74 = arith.constant 0 : index
    %273 = vector.load %arg4[%c0_73, %c0_74] : memref<1x128xf32, #tpu.memory_space<vmem>>, vector<1x128xf32>
    %274 = vector.broadcast %273 : vector<1x128xf32> to vector<8x128xf32>
    %275 = arith.mulf %272, %274 : vector<8x128xf32>
    %cst_75 = arith.constant dense<0.000000e+00> : vector<8xf32>
    %276 = vector.multi_reduction <add>, %275, %cst_75 [1] : vector<8x128xf32> to vector<8xf32>
    %277 = vector.shape_cast %276 : vector<8xf32> to vector<8x1xf32>
    %c0_76 = arith.constant 0 : index
    %c0_77 = arith.constant 0 : index
    %278 = memref.load %arg5[%c0_76, %c0_77] : memref<1x1xf32, #tpu.memory_space<smem>>
    %279 = vector.broadcast %278 : f32 to vector<8x1xf32>
    %280 = arith.addf %277, %279 : vector<8x1xf32>
    %c0_78 = arith.constant 0 : index
    %c0_79 = arith.constant 0 : index
    %281 = vector.load %arg6[%c0_78, %c0_79] : memref<8x1xf32, #tpu.memory_space<vmem>>, vector<8x1xf32>
    tpu.vector_store %arg6[%c0_78, %c0_79], %280 {strides = array<i32>} : memref<8x1xf32, #tpu.memory_space<vmem>>, vector<8x1xf32>,
    return
  }
}

</mosaic_0001>

<llo_original>
// kernel: tpu_custom_call.1
$region0: #{tpu_custom_call.1}
  #allocation0 [shape = 'u32[]', space=smem, size = 0x4, offset = 0x4, fixed_abs, tag = 'smem constant byte address 0x4 - core index']
  #allocation1 [shape = 'u32[144,128]{1,0:T(1,128)}', space=vmem, size = 0x12000, scoped, tag = 'internal scratch']
  #allocation2 [shape = 'f32[64,512]{1,0:T(8,128)}', space=vmem, size = 0x20000, scoped, tag = 'scratch operand']
  #allocation3 [shape = 'f32[1,1]{1,0:T(1,128)S(6)}', space=smem, size = 0x200, scoped, tag = 'scoped memory for tpu_custom_call.1']
  %s0 = inlined_call_operand.vmem [shape: f32[64,6], index: 0, kind: input, shape index: {}]
  %s1 = inlined_call_operand.vmem [shape: f32[6,512], index: 1, kind: input, shape index: {}]
  %s2 = inlined_call_operand.hbm [shape: bf16[128,512], index: 2, kind: input, shape index: {}]
  %s3 = inlined_call_operand.vmem [shape: f32[1,512], index: 3, kind: input, shape index: {}]
  %s4 = inlined_call_operand.vmem [shape: f32[1,128], index: 4, kind: input, shape index: {}]
  %s5 = inlined_call_operand.<no memory space> [shape: f32[1,1], index: 5, kind: input, shape index: {}]
  %s6 = inlined_call_operand.vmem [shape: f32[8,1], index: 6, kind: output, shape index: {}]
  %s7 = sld [smem:[#allocation0]]
  $region38: #{tpu_custom_call.1} parent=0
    _
  %s9 = ssub.s32 1, %s7
  %s10 = scalar_select 0, %s9, %s7
  %11 = sst [smem:[#allocation3]] %s5
  $region1: #{tpu_custom_call.1} parent=0
    #allocation4 [shape = 'u8[131072]{0}', space=vmem, size = 0x20000, scoped, tag = 'input window, operand 2, single buffered']
    #allocation5 [shape = 's32[1]{0}', space=sflag, size = 0x4, scoped, tag = 'scoped memory for tpu_custom_call.1']
    %12 = vsyncpa [#allocation5], 0
    // Predicated region
    $region2: #{tpu_custom_call.1} parent=1 // pred_check
      _
    $region3: #{tpu_custom_call.1} parent=1 // pred_check_branch
      %14 = sbr.rel (0) target = $region5
    $region4: #{tpu_custom_call.1} parent=1 // pred_region
      _
    $region5: #{tpu_custom_call.1} parent=1 // pred_fallthru
      _
    // Predicated region
    $region6: #{tpu_custom_call.1} parent=1 // pred_check
      _
    $region7: #{tpu_custom_call.1} parent=1 // pred_check_branch
      %16 = sbr.rel (0) target = $region9
    $region8: #{tpu_custom_call.1} parent=1 // pred_region
      _
    $region9: #{tpu_custom_call.1} parent=1 // pred_fallthru
      _
    // Predicated region
    $region10: #{tpu_custom_call.1} parent=1 // pred_check
      _
    $region11: #{tpu_custom_call.1} parent=1 // pred_check_branch
      %18 = sbr.rel (0) target = $region13
    $region12: #{tpu_custom_call.1} parent=1 // pred_region
      %s20 = ssub.s32 4096, 4096
      %21 = vsyncadd [#allocation5], %s20
      %s22 = sshll.u32 [#allocation4], 4
      %s23 = int_to_ptr.vmem [resolvable:$true] %s22
      %28 = dma.hbm_to_vmem [thread:$0]  %s2, 4096, %s23, [#allocation5], 256, 256, 16
    $region13: #{tpu_custom_call.1} parent=1 // pred_fallthru
      _
    // Predicated region
    $region14: #{tpu_custom_call.1} parent=1 // pred_check
      _
    $region15: #{tpu_custom_call.1} parent=1 // pred_check_branch
      %30 = sbr.rel (0) target = $region17
    $region16: #{tpu_custom_call.1} parent=1 // pred_region
      _
    $region17: #{tpu_custom_call.1} parent=1 // pred_fallthru
      _
    // Predicated region
    $region18: #{tpu_custom_call.1} parent=1 // pred_check
      _
    $region19: #{tpu_custom_call.1} parent=1 // pred_check_branch
      %32 = sbr.rel (0) target = $region21
    $region20: #{tpu_custom_call.1} parent=1 // pred_region
      _
    $region21: #{tpu_custom_call.1} parent=1 // pred_fallthru
      _
    // Predicated region
    $region22: #{tpu_custom_call.1} parent=1 // pred_check
      _
    $region23: #{tpu_custom_call.1} parent=1 // pred_check_branch
      %34 = sbr.rel (0) target = $region25
    $region24: #{tpu_custom_call.1} parent=1 // pred_region
      _
    $region25: #{tpu_custom_call.1} parent=1 // pred_fallthru
      _
    // Predicated region
    $region26: #{tpu_custom_call.1} parent=1 // pred_check
      _
    $region27: #{tpu_custom_call.1} parent=1 // pred_check_branch
      %36 = sbr.rel (0) target = $region29
    $region28: #{tpu_custom_call.1} parent=1 // pred_region
      %37 = dma.done [#allocation5], 4096
    $region29: #{tpu_custom_call.1} parent=1 // pred_fallthru
      _
    %v39 = vld [vmem:[%s0] sm:$0xff]
    %v40 = vld [vmem:[%s0 + $0x8] sm:$0xff]
    %v41 = vld [vmem:[%s0 + $0x10] sm:$0xff]
    %v42 = vld [vmem:[%s0 + $0x18] sm:$0xff]
    %v43 = vld [vmem:[%s0 + $0x20] sm:$0xff]
    %v44 = vld [vmem:[%s0 + $0x28] sm:$0xff]
    %v45 = vld [vmem:[%s0 + $0x30] sm:$0xff]
    %v46 = vld [vmem:[%s0 + $0x38] sm:$0xff]
    %v47 = vld [vmem:[%s1] sm:$0x3f]
    %v48 = vld [vmem:[%s1 + $0x8] sm:$0x3f]
    %v49 = vld [vmem:[%s1 + $0x10] sm:$0x3f]
    %v50 = vld [vmem:[%s1 + $0x18] sm:$0x3f]
    %v51 = vld [vmem:[%s3] sm:$0xf]
    %v53 = vlaneseq
    %v54 = vshrl.u32 %v53, 7
    %v55 = vsub.s32 0, %v54
    %v56 = vrot.slane %v51, %v55
    %v57 = vlaneseq
    %v58 = vshrl.u32 %v57, 7
    %v59 = vsub.s32 1, %v58
    %v60 = vrot.slane %v51, %v59
    %v61 = vlaneseq
    %v62 = vshrl.u32 %v61, 7
    %v63 = vsub.s32 2, %v62
    %v64 = vrot.slane %v51, %v63
    %v65 = vlaneseq
    %v66 = vshrl.u32 %v65, 7
    %v67 = vsub.s32 3, %v66
    %v68 = vrot.slane %v51, %v67
    %vm73 = vcmask 48128
    %v75 = vsel %vm73, %v39, 0
    %v78 = vsel %vm73, %v40, 0
    %v81 = vsel %vm73, %v41, 0
    %v84 = vsel %vm73, %v42, 0
    %v87 = vsel %vm73, %v43, 0
    %v90 = vsel %vm73, %v44, 0
    %v93 = vsel %vm73, %v45, 0
    %v96 = vsel %vm73, %v46, 0
    %vm98 = vcmask 1045504
    %v100 = vsel %vm98, %v47, 0
    %v103 = vsel %vm98, %v48, 0
    %v106 = vsel %vm98, %v49, 0
    %v109 = vsel %vm98, %v50, 0
    %111 = vmatprep.subr.mxu0 %v103
    %112 = vmatpush1.msra.mxu0 %v100
    %113 = vmatprep.subr.mxu0 0.0
    %114 = vmatpush1.msra.mxu0 0.0
    %115 = vmatprep.subr.mxu0 0.0
    %116 = vmatpush1.msra.mxu0 0.0
    %117 = vmatprep.subr.mxu0 0.0
    %118 = vmatpush1.msra.mxu0 0.0
    %119 = vmatprep.subr.mxu0 0.0
    %120 = vmatpush1.msra.mxu0 0.0
    %121 = vmatprep.subr.mxu0 0.0
    %122 = vmatpush1.msra.mxu0 0.0
    %123 = vmatprep.subr.mxu0 0.0
    %124 = vmatpush1.msra.mxu0 0.0
    %125 = vmatprep.subr.mxu0 0.0
    %126 = vmatpush1.msra.mxu0 0.0
    %127 = vmatprep.subr.mxu0 0.0
    %128 = vmatpush1.msra.mxu0 0.0
    %129 = vmatprep.subr.mxu0 0.0
    %130 = vmatpush1.msra.mxu0 0.0
    %131 = vmatprep.subr.mxu0 0.0
    %132 = vmatpush1.msra.mxu0 0.0
    %133 = vmatprep.subr.mxu0 0.0
    %134 = vmatpush1.msra.mxu0 0.0
    %135 = vmatprep.subr.mxu0 0.0
    %136 = vmatpush1.msra.mxu0 0.0
    %137 = vmatprep.subr.mxu0 0.0
    %138 = vmatpush1.msra.mxu0 0.0
    %139 = vmatprep.subr.mxu0 0.0
    %140 = vmatpush1.msra.mxu0 0.0
    %141 = vmatprep.subr.mxu0 0.0
    %142 = vmatpush1.msra.mxu0 0.0
    %143 = vmatprep.subr.mxu0 0.0
    %144 = vmatpush1.msra.mxu0 0.0
    %145 = vmatprep.subr.mxu0 0.0
    %146 = vmatpush1.msra.mxu0 0.0
    %147 = vmatprep.subr.mxu0 0.0
    %148 = vmatpush1.msra.mxu0 0.0
    %149 = vmatprep.subr.mxu0 0.0
    %150 = vmatpush1.msra.mxu0 0.0
    %151 = vmatprep.subr.mxu0 0.0
    %152 = vmatpush1.msra.mxu0 0.0
    %153 = vmatprep.subr.mxu0 0.0
    %154 = vmatpush1.msra.mxu0 0.0
    %155 = vmatprep.subr.mxu0 0.0
    %156 = vmatpush1.msra.mxu0 0.0
    %157 = vmatprep.subr.mxu0 0.0
    %158 = vmatpush1.msra.mxu0 0.0
    %159 = vmatprep.subr.mxu0 0.0
    %160 = vmatpush1.msra.mxu0 0.0
    %161 = vmatprep.subr.mxu0 0.0
    %162 = vmatpush1.msra.mxu0 0.0
    %163 = vmatprep.subr.mxu0 0.0
    %164 = vmatpush1.msra.mxu0 0.0
    %165 = vmatprep.subr.mxu0 0.0
    %166 = vmatpush1.msra.mxu0 0.0
    %167 = vmatprep.subr.mxu0 0.0
    %168 = vmatpush1.msra.mxu0 0.0
    %169 = vmatprep.subr.mxu0 0.0
    %170 = vmatpush1.msra.mxu0 0.0
    %171 = vmatprep.subr.mxu0 0.0
    %172 = vmatpush1.msra.mxu0 0.0
    %173 = vmatprep.subr.mxu0 0.0
    %174 = vmatpush1.msra.mxu0 0.0
    %175 = vmatprep.mubr.f32.mxu0 0.0
    %176 = vmatmul.mubr.f32.gmra.mrb[0].mxu0 %v75
    %v177 = vpop.f32.mrb[0].mxu0
    %v178 = vadd.f32 %v56, %v177
    %v179 = vpop.f32.mrb[0].mxu0
    %v180 = vadd.f32 %v60, %v179
    %181 = vmatprep.mubr.f32.mxu0 0.0
    %182 = vmatmul.mubr.f32.gmra.mrb[0].mxu0 %v78
    %v183 = vpop.f32.mrb[0].mxu0
    %v184 = vadd.f32 %v56, %v183
    %v185 = vpop.f32.mrb[0].mxu0
    %v186 = vadd.f32 %v60, %v185
    %187 = vmatprep.mubr.f32.mxu0 0.0
    %188 = vmatmul.mubr.f32.gmra.mrb[0].mxu0 %v81
    %v189 = vpop.f32.mrb[0].mxu0
    %v190 = vadd.f32 %v56, %v189
    %v191 = vpop.f32.mrb[0].mxu0
    %v192 = vadd.f32 %v60, %v191
    %193 = vmatprep.mubr.f32.mxu0 0.0
    %194 = vmatmul.mubr.f32.gmra.mrb[0].mxu0 %v84
    %v195 = vpop.f32.mrb[0].mxu0
    %v196 = vadd.f32 %v56, %v195
    %v197 = vpop.f32.mrb[0].mxu0
    %v198 = vadd.f32 %v60, %v197
    %199 = vmatprep.mubr.f32.mxu0 0.0
    %200 = vmatmul.mubr.f32.gmra.mrb[0].mxu0 %v87
    %v201 = vpop.f32.mrb[0].mxu0
    %v202 = vadd.f32 %v56, %v201
    %v203 = vpop.f32.mrb[0].mxu0
    %v204 = vadd.f32 %v60, %v203
    %205 = vmatprep.mubr.f32.mxu0 0.0
    %206 = vmatmul.mubr.f32.gmra.mrb[0].mxu0 %v90
    %v207 = vpop.f32.mrb[0].mxu0
    %v208 = vadd.f32 %v56, %v207
    %v209 = vpop.f32.mrb[0].mxu0
    %v210 = vadd.f32 %v60, %v209
    %211 = vmatprep.mubr.f32.mxu0 0.0
    %212 = vmatmul.mubr.f32.gmra.mrb[0].mxu0 %v93
    %v213 = vpop.f32.mrb[0].mxu0
    %v214 = vadd.f32 %v56, %v213
    %v215 = vpop.f32.mrb[0].mxu0
    %v216 = vadd.f32 %v60, %v215
    %217 = vmatprep.mubr.f32.mxu0 0.0
    %218 = vmatmul.mubr.f32.gmra.mrb[0].mxu0 %v96
    %v219 = vpop.f32.mrb[0].mxu0
    %v220 = vadd.f32 %v56, %v219
    %v221 = vpop.f32.mrb[0].mxu0
    %v222 = vadd.f32 %v60, %v221
    %223 = vdwg.mxu0
    %224 = vmatprep.subr.mxu0 %v109
    %225 = vmatpush1.msra.mxu0 %v106
    %226 = vmatprep.subr.mxu0 0.0
    %227 = vmatpush1.msra.mxu0 0.0
    %228 = vmatprep.subr.mxu0 0.0
    %229 = vmatpush1.msra.mxu0 0.0
    %230 = vmatprep.subr.mxu0 0.0
    %231 = vmatpush1.msra.mxu0 0.0
    %232 = vmatprep.subr.mxu0 0.0
    %233 = vmatpush1.msra.mxu0 0.0
    %234 = vmatprep.subr.mxu0 0.0
    %235 = vmatpush1.msra.mxu0 0.0
    %236 = vmatprep.subr.mxu0 0.0
    %237 = vmatpush1.msra.mxu0 0.0
    %238 = vmatprep.subr.mxu0 0.0
    %239 = vmatpush1.msra.mxu0 0.0
    %240 = vmatprep.subr.mxu0 0.0
    %241 = vmatpush1.msra.mxu0 0.0
    %242 = vmatprep.subr.mxu0 0.0
    %243 = vmatpush1.msra.mxu0 0.0
    %244 = vmatprep.subr.mxu0 0.0
    %245 = vmatpush1.msra.mxu0 0.0
    %246 = vmatprep.subr.mxu0 0.0
    %247 = vmatpush1.msra.mxu0 0.0
    %248 = vmatprep.subr.mxu0 0.0
    %249 = vmatpush1.msra.mxu0 0.0
    %250 = vmatprep.subr.mxu0 0.0
    %251 = vmatpush1.msra.mxu0 0.0
    %252 = vmatprep.subr.mxu0 0.0
    %253 = vmatpush1.msra.mxu0 0.0
    %254 = vmatprep.subr.mxu0 0.0
    %255 = vmatpush1.msra.mxu0 0.0
    %256 = vmatprep.subr.mxu0 0.0
    %257 = vmatpush1.msra.mxu0 0.0
    %258 = vmatprep.subr.mxu0 0.0
    %259 = vmatpush1.msra.mxu0 0.0
    %260 = vmatprep.subr.mxu0 0.0
    %261 = vmatpush1.msra.mxu0 0.0
    %262 = vmatprep.subr.mxu0 0.0
    %263 = vmatpush1.msra.mxu0 0.0
    %264 = vmatprep.subr.mxu0 0.0
    %265 = vmatpush1.msra.mxu0 0.0
    %266 = vmatprep.subr.mxu0 0.0
    %267 = vmatpush1.msra.mxu0 0.0
    %268 = vmatprep.subr.mxu0 0.0
    %269 = vmatpush1.msra.mxu0 0.0
    %270 = vmatprep.subr.mxu0 0.0
    %271 = vmatpush1.msra.mxu0 0.0
    %272 = vmatprep.subr.mxu0 0.0
    %273 = vmatpush1.msra.mxu0 0.0
    %274 = vmatprep.subr.mxu0 0.0
    %275 = vmatpush1.msra.mxu0 0.0
    %276 = vmatprep.subr.mxu0 0.0
    %277 = vmatpush1.msra.mxu0 0.0
    %278 = vmatprep.subr.mxu0 0.0
    %279 = vmatpush1.msra.mxu0 0.0
    %280 = vmatprep.subr.mxu0 0.0
    %281 = vmatpush1.msra.mxu0 0.0
    %282 = vmatprep.subr.mxu0 0.0
    %283 = vmatpush1.msra.mxu0 0.0
    %284 = vmatprep.subr.mxu0 0.0
    %285 = vmatpush1.msra.mxu0 0.0
    %286 = vmatprep.subr.mxu0 0.0
    %287 = vmatpush1.msra.mxu0 0.0
    %288 = vmatprep.mubr.f32.mxu0 0.0
    %289 = vmatmul.mubr.f32.gmra.mrb[0].mxu0 %v75
    %v290 = vpop.f32.mrb[0].mxu0
    %v291 = vadd.f32 %v64, %v290
    %v292 = vpop.f32.mrb[0].mxu0
    %v293 = vadd.f32 %v68, %v292
    %294 = vmatprep.mubr.f32.mxu0 0.0
    %295 = vmatmul.mubr.f32.gmra.mrb[0].mxu0 %v78
    %v296 = vpop.f32.mrb[0].mxu0
    %v297 = vadd.f32 %v64, %v296
    %v298 = vpop.f32.mrb[0].mxu0
    %v299 = vadd.f32 %v68, %v298
    %300 = vmatprep.mubr.f32.mxu0 0.0
    %301 = vmatmul.mubr.f32.gmra.mrb[0].mxu0 %v81
    %v302 = vpop.f32.mrb[0].mxu0
    %v303 = vadd.f32 %v64, %v302
    %v304 = vpop.f32.mrb[0].mxu0
    %v305 = vadd.f32 %v68, %v304
    %306 = vmatprep.mubr.f32.mxu0 0.0
    %307 = vmatmul.mubr.f32.gmra.mrb[0].mxu0 %v84
    %v308 = vpop.f32.mrb[0].mxu0
    %v309 = vadd.f32 %v64, %v308
    %v310 = vpop.f32.mrb[0].mxu0
    %v311 = vadd.f32 %v68, %v310
    %312 = vmatprep.mubr.f32.mxu0 0.0
    %313 = vmatmul.mubr.f32.gmra.mrb[0].mxu0 %v87
    %v314 = vpop.f32.mrb[0].mxu0
    %v315 = vadd.f32 %v64, %v314
    %v316 = vpop.f32.mrb[0].mxu0
    %v317 = vadd.f32 %v68, %v316
    %318 = vmatprep.mubr.f32.mxu0 0.0
    %319 = vmatmul.mubr.f32.gmra.mrb[0].mxu0 %v90
    %v320 = vpop.f32.mrb[0].mxu0
    %v321 = vadd.f32 %v64, %v320
    %v322 = vpop.f32.mrb[0].mxu0
    %v323 = vadd.f32 %v68, %v322
    %324 = vmatprep.mubr.f32.mxu0 0.0
    %325 = vmatmul.mubr.f32.gmra.mrb[0].mxu0 %v93
    %v326 = vpop.f32.mrb[0].mxu0
    %v327 = vadd.f32 %v64, %v326
    %v328 = vpop.f32.mrb[0].mxu0
    %v329 = vadd.f32 %v68, %v328
    %330 = vmatprep.mubr.f32.mxu0 0.0
    %331 = vmatmul.mubr.f32.gmra.mrb[0].mxu0 %v96
    %v332 = vpop.f32.mrb[0].mxu0
    %v333 = vadd.f32 %v64, %v332
    %v334 = vpop.f32.mrb[0].mxu0
    %v335 = vadd.f32 %v68, %v334
    %336 = vdwg.mxu0
    %337 = vst [vmem:[#allocation2] sm:$0xff] %v178
    %338 = vst [vmem:[#allocation2 + $0x8] sm:$0xff] %v180
    %339 = vst [vmem:[#allocation2 + $0x10] sm:$0xff] %v291
    %340 = vst [vmem:[#allocation2 + $0x18] sm:$0xff] %v293
    %341 = vst [vmem:[#allocation2 + $0x20] sm:$0xff] %v184
    %342 = vst [vmem:[#allocation2 + $0x28] sm:$0xff] %v186
    %343 = vst [vmem:[#allocation2 + $0x30] sm:$0xff] %v297
    %344 = vst [vmem:[#allocation2 + $0x38] sm:$0xff] %v299
    %345 = vst [vmem:[#allocation2 + $0x40] sm:$0xff] %v190
    %346 = vst [vmem:[#allocation2 + $0x48] sm:$0xff] %v192
    %347 = vst [vmem:[#allocation2 + $0x50] sm:$0xff] %v303
    %348 = vst [vmem:[#allocation2 + $0x58] sm:$0xff] %v305
    %349 = vst [vmem:[#allocation2 + $0x60] sm:$0xff] %v196
    %350 = vst [vmem:[#allocation2 + $0x68] sm:$0xff] %v198
    %351 = vst [vmem:[#allocation2 + $0x70] sm:$0xff] %v309
    %352 = vst [vmem:[#allocation2 + $0x78] sm:$0xff] %v311
    %353 = vst [vmem:[#allocation2 + $0x80] sm:$0xff] %v202
    %354 = vst [vmem:[#allocation2 + $0x88] sm:$0xff] %v204
    %355 = vst [vmem:[#allocation2 + $0x90] sm:$0xff] %v315
    %356 = vst [vmem:[#allocation2 + $0x98] sm:$0xff] %v317
    %357 = vst [vmem:[#allocation2 + $0xa0] sm:$0xff] %v208
    %358 = vst [vmem:[#allocation2 + $0xa8] sm:$0xff] %v210
    %359 = vst [vmem:[#allocation2 + $0xb0] sm:$0xff] %v321
    %360 = vst [vmem:[#allocation2 + $0xb8] sm:$0xff] %v323
    %361 = vst [vmem:[#allocation2 + $0xc0] sm:$0xff] %v214
    %362 = vst [vmem:[#allocation2 + $0xc8] sm:$0xff] %v216
    %363 = vst [vmem:[#allocation2 + $0xd0] sm:$0xff] %v327
    %364 = vst [vmem:[#allocation2 + $0xd8] sm:$0xff] %v329
    %365 = vst [vmem:[#allocation2 + $0xe0] sm:$0xff] %v220
    %366 = vst [vmem:[#allocation2 + $0xe8] sm:$0xff] %v222
    %367 = vst [vmem:[#allocation2 + $0xf0] sm:$0xff] %v333
    %368 = vst [vmem:[#allocation2 + $0xf8] sm:$0xff] %v335
    %s369 = smul.u32 0, 4
    %s370 = smul.addr %s369, 8
    %s371 = scalar_lea.vmem [#allocation2], %s370
    %v372 = vld [vmem:[%s371] sm:$0xff]
    %v373 = vld [vmem:[%s371 + $0x8] sm:$0xff]
    %v374 = vld [vmem:[%s371 + $0x10] sm:$0xff]
    %v375 = vld [vmem:[%s371 + $0x18] sm:$0xff]
    %v376 = vld [vmem:[#allocation4] sm:$0xff]
    %v377 = vld [vmem:[#allocation4 + $0x8] sm:$0xff]
    %v378 = vld [vmem:[#allocation4 + $0x10] sm:$0xff]
    %v379 = vld [vmem:[#allocation4 + $0x18] sm:$0xff]
    %v380 = vld [vmem:[#allocation4 + $0x20] sm:$0xff]
    %v381 = vld [vmem:[#allocation4 + $0x28] sm:$0xff]
    %v382 = vld [vmem:[#allocation4 + $0x30] sm:$0xff]
    %v383 = vld [vmem:[#allocation4 + $0x38] sm:$0xff]
    %v384 = vld [vmem:[#allocation4 + $0x40] sm:$0xff]
    %v385 = vld [vmem:[#allocation4 + $0x48] sm:$0xff]
    %v386 = vld [vmem:[#allocation4 + $0x50] sm:$0xff]
    %v387 = vld [vmem:[#allocation4 + $0x58] sm:$0xff]
    %v388 = vld [vmem:[#allocation4 + $0x60] sm:$0xff]
    %v389 = vld [vmem:[#allocation4 + $0x68] sm:$0xff]
    %v390 = vld [vmem:[#allocation4 + $0x70] sm:$0xff]
    %v391 = vld [vmem:[#allocation4 + $0x78] sm:$0xff]
    %v392 = vld [vmem:[#allocation4 + $0x80] sm:$0xff]
    %v393 = vld [vmem:[#allocation4 + $0x88] sm:$0xff]
    %v394 = vld [vmem:[#allocation4 + $0x90] sm:$0xff]
    %v395 = vld [vmem:[#allocation4 + $0x98] sm:$0xff]
    %v396 = vld [vmem:[#allocation4 + $0xa0] sm:$0xff]
    %v397 = vld [vmem:[#allocation4 + $0xa8] sm:$0xff]
    %v398 = vld [vmem:[#allocation4 + $0xb0] sm:$0xff]
    %v399 = vld [vmem:[#allocation4 + $0xb8] sm:$0xff]
    %v400 = vld [vmem:[#allocation4 + $0xc0] sm:$0xff]
    %v401 = vld [vmem:[#allocation4 + $0xc8] sm:$0xff]
    %v402 = vld [vmem:[#allocation4 + $0xd0] sm:$0xff]
    %v403 = vld [vmem:[#allocation4 + $0xd8] sm:$0xff]
    %v404 = vld [vmem:[#allocation4 + $0xe0] sm:$0xff]
    %v405 = vld [vmem:[#allocation4 + $0xe8] sm:$0xff]
    %v406 = vld [vmem:[#allocation4 + $0xf0] sm:$0xff]
    %v407 = vld [vmem:[#allocation4 + $0xf8] sm:$0xff]
    %v440 = vunpack.c.l.b16 %v376
    %v441 = vunpack.c.h.b16 %v376
    %v442 = vunpack.c.l.b16 %v377
    %v443 = vunpack.c.h.b16 %v377
    %v444 = vunpack.c.l.b16 %v378
    %v445 = vunpack.c.h.b16 %v378
    %v446 = vunpack.c.l.b16 %v379
    %v447 = vunpack.c.h.b16 %v379
    %v448 = vunpack.c.l.b16 %v380
    %v449 = vunpack.c.h.b16 %v380
    %v450 = vunpack.c.l.b16 %v381
    %v451 = vunpack.c.h.b16 %v381
    %v452 = vunpack.c.l.b16 %v382
    %v453 = vunpack.c.h.b16 %v382
    %v454 = vunpack.c.l.b16 %v383
    %v455 = vunpack.c.h.b16 %v383
    %v456 = vunpack.c.l.b16 %v384
    %v457 = vunpack.c.h.b16 %v384
    %v458 = vunpack.c.l.b16 %v385
    %v459 = vunpack.c.h.b16 %v385
    %v460 = vunpack.c.l.b16 %v386
    %v461 = vunpack.c.h.b16 %v386
    %v462 = vunpack.c.l.b16 %v387
    %v463 = vunpack.c.h.b16 %v387
    %v464 = vunpack.c.l.b16 %v388
    %v465 = vunpack.c.h.b16 %v388
    %v466 = vunpack.c.l.b16 %v389
    %v467 = vunpack.c.h.b16 %v389
    %v468 = vunpack.c.l.b16 %v390
    %v469 = vunpack.c.h.b16 %v390
    %v470 = vunpack.c.l.b16 %v391
    %v471 = vunpack.c.h.b16 %v391
    %v472 = vunpack.c.l.b16 %v392
    %v473 = vunpack.c.h.b16 %v392
    %v474 = vunpack.c.l.b16 %v393
    %v475 = vunpack.c.h.b16 %v393
    %v476 = vunpack.c.l.b16 %v394
    %v477 = vunpack.c.h.b16 %v394
    %v478 = vunpack.c.l.b16 %v395
    %v479 = vunpack.c.h.b16 %v395
    %v480 = vunpack.c.l.b16 %v396
    %v481 = vunpack.c.h.b16 %v396
    %v482 = vunpack.c.l.b16 %v397
    %v483 = vunpack.c.h.b16 %v397
    %v484 = vunpack.c.l.b16 %v398
    %v485 = vunpack.c.h.b16 %v398
    %v486 = vunpack.c.l.b16 %v399
    %v487 = vunpack.c.h.b16 %v399
    %v488 = vunpack.c.l.b16 %v400
    %v489 = vunpack.c.h.b16 %v400
    %v490 = vunpack.c.l.b16 %v401
    %v491 = vunpack.c.h.b16 %v401
    %v492 = vunpack.c.l.b16 %v402
    %v493 = vunpack.c.h.b16 %v402
    %v494 = vunpack.c.l.b16 %v403
    %v495 = vunpack.c.h.b16 %v403
    %v496 = vunpack.c.l.b16 %v404
    %v497 = vunpack.c.h.b16 %v404
    %v498 = vunpack.c.l.b16 %v405
    %v499 = vunpack.c.h.b16 %v405
    %v500 = vunpack.c.l.b16 %v406
    %v501 = vunpack.c.h.b16 %v406
    %v502 = vunpack.c.l.b16 %v407
    %v503 = vunpack.c.h.b16 %v407
    %v504 = vpack.c.b16 %v444, %v440
    %v505 = vpack.c.b16 %v445, %v441
    %v506 = vpack.c.b16 %v446, %v442
    %v507 = vpack.c.b16 %v447, %v443
    %v508 = vpack.c.b16 %v452, %v448
    %v509 = vpack.c.b16 %v453, %v449
    %v510 = vpack.c.b16 %v454, %v450
    %v511 = vpack.c.b16 %v455, %v451
    %v512 = vpack.c.b16 %v460, %v456
    %v513 = vpack.c.b16 %v461, %v457
    %v514 = vpack.c.b16 %v462, %v458
    %v515 = vpack.c.b16 %v463, %v459
    %v516 = vpack.c.b16 %v468, %v464
    %v517 = vpack.c.b16 %v469, %v465
    %v518 = vpack.c.b16 %v470, %v466
    %v519 = vpack.c.b16 %v471, %v467
    %v520 = vpack.c.b16 %v476, %v472
    %v521 = vpack.c.b16 %v477, %v473
    %v522 = vpack.c.b16 %v478, %v474
    %v523 = vpack.c.b16 %v479, %v475
    %v524 = vpack.c.b16 %v484, %v480
    %v525 = vpack.c.b16 %v485, %v481
    %v526 = vpack.c.b16 %v486, %v482
    %v527 = vpack.c.b16 %v487, %v483
    %v528 = vpack.c.b16 %v492, %v488
    %v529 = vpack.c.b16 %v493, %v489
    %v530 = vpack.c.b16 %v494, %v490
    %v531 = vpack.c.b16 %v495, %v491
    %v532 = vpack.c.b16 %v500, %v496
    %v533 = vpack.c.b16 %v501, %v497
    %v534 = vpack.c.b16 %v502, %v498
    %v535 = vpack.c.b16 %v503, %v499
    %568 = vmatprep.subr.bf16.mxu0 %v505
    %569 = vmatpush1.bf16.msra.mxu0 %v504
    %570 = vmatprep.subr.bf16.mxu0 %v509
    %571 = vmatpush1.bf16.msra.mxu0 %v508
    %572 = vmatprep.subr.bf16.mxu0 %v513
    %573 = vmatpush1.bf16.msra.mxu0 %v512
    %574 = vmatprep.subr.bf16.mxu0 %v517
    %575 = vmatpush1.bf16.msra.mxu0 %v516
    %576 = vmatprep.subr.bf16.mxu0 %v521
    %577 = vmatpush1.bf16.msra.mxu0 %v520
    %578 = vmatprep.subr.bf16.mxu0 %v525
    %579 = vmatpush1.bf16.msra.mxu0 %v524
    %580 = vmatprep.subr.bf16.mxu0 %v529
    %581 = vmatpush1.bf16.msra.mxu0 %v528
    %582 = vmatprep.subr.bf16.mxu0 %v533
    %583 = vmatpush1.bf16.msra.mxu0 %v532
    %584 = vmatprep.subr.bf16.mxu0 0
    %585 = vmatpush1.bf16.msra.mxu0 0
    %586 = vmatprep.subr.bf16.mxu0 0
    %587 = vmatpush1.bf16.msra.mxu0 0
    %588 = vmatprep.subr.bf16.mxu0 0
    %589 = vmatpush1.bf16.msra.mxu0 0
    %590 = vmatprep.subr.bf16.mxu0 0
    %591 = vmatpush1.bf16.msra.mxu0 0
    %592 = vmatprep.subr.bf16.mxu0 0
    %593 = vmatpush1.bf16.msra.mxu0 0
    %594 = vmatprep.subr.bf16.mxu0 0
    %595 = vmatpush1.bf16.msra.mxu0 0
    %596 = vmatprep.subr.bf16.mxu0 0
    %597 = vmatpush1.bf16.msra.mxu0 0
    %598 = vmatprep.subr.bf16.mxu0 0
    %599 = vmatpush1.bf16.msra.mxu0 0
    %600 = vmatprep.mubr.bf16.mxu0 0
    %601 = vmatmul.mubr.bf16.gmra.mrb[0].mxu0 0
    %v602 = vpop.f32.mrb[0].mxu0
    %v603 = vadd.f32 0.0, %v602
    %v604 = vpop.f32.mrb[0].mxu0
    %v605 = vadd.f32 0.0, %v604
    %v606 = vpop.f32.mrb[0].mxu0
    %v607 = vpop.f32.mrb[0].mxu0
    %608 = vdwg.mxu0
    %609 = vmatprep.subr.bf16.mxu0 %v507
    %610 = vmatpush1.bf16.msra.mxu0 %v506
    %611 = vmatprep.subr.bf16.mxu0 %v511
    %612 = vmatpush1.bf16.msra.mxu0 %v510
    %613 = vmatprep.subr.bf16.mxu0 %v515
    %614 = vmatpush1.bf16.msra.mxu0 %v514
    %615 = vmatprep.subr.bf16.mxu0 %v519
    %616 = vmatpush1.bf16.msra.mxu0 %v518
    %617 = vmatprep.subr.bf16.mxu0 %v523
    %618 = vmatpush1.bf16.msra.mxu0 %v522
    %619 = vmatprep.subr.bf16.mxu0 %v527
    %620 = vmatpush1.bf16.msra.mxu0 %v526
    %621 = vmatprep.subr.bf16.mxu0 %v531
    %622 = vmatpush1.bf16.msra.mxu0 %v530
    %623 = vmatprep.subr.bf16.mxu0 %v535
    %624 = vmatpush1.bf16.msra.mxu0 %v534
    %625 = vmatprep.subr.bf16.mxu0 0
    %626 = vmatpush1.bf16.msra.mxu0 0
    %627 = vmatprep.subr.bf16.mxu0 0
    %628 = vmatpush1.bf16.msra.mxu0 0
    %629 = vmatprep.subr.bf16.mxu0 0
    %630 = vmatpush1.bf16.msra.mxu0 0
    %631 = vmatprep.subr.bf16.mxu0 0
    %632 = vmatpush1.bf16.msra.mxu0 0
    %633 = vmatprep.subr.bf16.mxu0 0
    %634 = vmatpush1.bf16.msra.mxu0 0
    %635 = vmatprep.subr.bf16.mxu0 0
    %636 = vmatpush1.bf16.msra.mxu0 0
    %637 = vmatprep.subr.bf16.mxu0 0
    %638 = vmatpush1.bf16.msra.mxu0 0
    %639 = vmatprep.subr.bf16.mxu0 0
    %640 = vmatpush1.bf16.msra.mxu0 0
    %641 = vmatprep.mubr.bf16.mxu0 0
    %642 = vmatmul.mubr.bf16.gmra.mrb[0].mxu0 0
    %v643 = vpop.f32.mrb[0].mxu0
    %v644 = vadd.f32 0.0, %v643
    %v645 = vpop.f32.mrb[0].mxu0
    %v646 = vadd.f32 0.0, %v645
    %v647 = vpop.f32.mrb[0].mxu0
    %v648 = vpop.f32.mrb[0].mxu0
    %649 = vdwg.mxu0
    %v650 = vadd.f32 %v372, %v603
    %v651 = vadd.f32 %v373, %v605
    %v652 = vadd.f32 %v374, %v644
    %v653 = vadd.f32 %v375, %v646
    %v654 = vxor.u32 %v650, 2147483648
    %v655 = vmul.f32 %v654, 1.442695
    %v656 = vpow.pop %v655
    %v657 = vadd.f32 %v656, 1.0
    %v658 = vrcp.pop %v657
    %v659 = vmul.f32 1.0, %v658
    %v660 = vxor.u32 %v651, 2147483648
    %v661 = vmul.f32 %v660, 1.442695
    %v662 = vpow.pop %v661
    %v663 = vadd.f32 %v662, 1.0
    %v664 = vrcp.pop %v663
    %v665 = vmul.f32 1.0, %v664
    %v666 = vtanh.pop %v652
    %v667 = vxor.u32 %v653, 2147483648
    %v668 = vmul.f32 %v667, 1.442695
    %v669 = vpow.pop %v668
    %v670 = vadd.f32 %v669, 1.0
    %v671 = vrcp.pop %v670
    %v672 = vmul.f32 1.0, %v671
    %v673 = vmul.f32 %v665, 0.0
    %v674 = vmul.f32 %v659, %v666
    %v675 = vadd.f32 %v673, %v674
    %v676 = vtanh.pop %v675
    %v677 = vmul.f32 %v672, %v676
    %s678 = smul.u32 1, 4
    %s679 = smul.addr %s678, 8
    %s680 = scalar_lea.vmem [#allocation2], %s679
    %v681 = vld [vmem:[%s680] sm:$0xff]
    %v682 = vld [vmem:[%s680 + $0x8] sm:$0xff]
    %v683 = vld [vmem:[%s680 + $0x10] sm:$0xff]
    %v684 = vld [vmem:[%s680 + $0x18] sm:$0xff]
    %v685 = vpack.c.bf16 %v677, %v677
    %686 = vmatprep.subr.bf16.mxu0 %v505
    %687 = vmatpush1.bf16.msra.mxu0 %v504
    %688 = vmatprep.subr.bf16.mxu0 %v509
    %689 = vmatpush1.bf16.msra.mxu0 %v508
    %690 = vmatprep.subr.bf16.mxu0 %v513
    %691 = vmatpush1.bf16.msra.mxu0 %v512
    %692 = vmatprep.subr.bf16.mxu0 %v517
    %693 = vmatpush1.bf16.msra.mxu0 %v516
    %694 = vmatprep.subr.bf16.mxu0 %v521
    %695 = vmatpush1.bf16.msra.mxu0 %v520
    %696 = vmatprep.subr.bf16.mxu0 %v525
    %697 = vmatpush1.bf16.msra.mxu0 %v524
    %698 = vmatprep.subr.bf16.mxu0 %v529
    %699 = vmatpush1.bf16.msra.mxu0 %v528
    %700 = vmatprep.subr.bf16.mxu0 %v533
    %701 = vmatpush1.bf16.msra.mxu0 %v532
    %702 = vmatprep.subr.bf16.mxu0 0
    %703 = vmatpush1.bf16.msra.mxu0 0
    %704 = vmatprep.subr.bf16.mxu0 0
    %705 = vmatpush1.bf16.msra.mxu0 0
    %706 = vmatprep.subr.bf16.mxu0 0
    %707 = vmatpush1.bf16.msra.mxu0 0
    %708 = vmatprep.subr.bf16.mxu0 0
    %709 = vmatpush1.bf16.msra.mxu0 0
    %710 = vmatprep.subr.bf16.mxu0 0
    %711 = vmatpush1.bf16.msra.mxu0 0
    %712 = vmatprep.subr.bf16.mxu0 0
    %713 = vmatpush1.bf16.msra.mxu0 0
    %714 = vmatprep.subr.bf16.mxu0 0
    %715 = vmatpush1.bf16.msra.mxu0 0
    %716 = vmatprep.subr.bf16.mxu0 0
    %717 = vmatpush1.bf16.msra.mxu0 0
    %718 = vmatprep.mubr.bf16.mxu0 0
    %719 = vmatmul.mubr.bf16.gmra.mrb[0].mxu0 %v685
    %v720 = vpop.f32.mrb[0].mxu0
    %v721 = vadd.f32 0.0, %v720
    %v722 = vpop.f32.mrb[0].mxu0
    %v723 = vadd.f32 0.0, %v722
    %v724 = vpop.f32.mrb[0].mxu0
    %v725 = vpop.f32.mrb[0].mxu0
    %726 = vdwg.mxu0
    %727 = vmatprep.subr.bf16.mxu0 %v507
    %728 = vmatpush1.bf16.msra.mxu0 %v506
    %729 = vmatprep.subr.bf16.mxu0 %v511
    %730 = vmatpush1.bf16.msra.mxu0 %v510
    %731 = vmatprep.subr.bf16.mxu0 %v515
    %732 = vmatpush1.bf16.msra.mxu0 %v514
    %733 = vmatprep.subr.bf16.mxu0 %v519
    %734 = vmatpush1.bf16.msra.mxu0 %v518
    %735 = vmatprep.subr.bf16.mxu0 %v523
    %736 = vmatpush1.bf16.msra.mxu0 %v522
    %737 = vmatprep.subr.bf16.mxu0 %v527
    %738 = vmatpush1.bf16.msra.mxu0 %v526
    %739 = vmatprep.subr.bf16.mxu0 %v531
    %740 = vmatpush1.bf16.msra.mxu0 %v530
    %741 = vmatprep.subr.bf16.mxu0 %v535
    %742 = vmatpush1.bf16.msra.mxu0 %v534
    %743 = vmatprep.subr.bf16.mxu0 0
    %744 = vmatpush1.bf16.msra.mxu0 0
    %745 = vmatprep.subr.bf16.mxu0 0
    %746 = vmatpush1.bf16.msra.mxu0 0
    %747 = vmatprep.subr.bf16.mxu0 0
    %748 = vmatpush1.bf16.msra.mxu0 0
    %749 = vmatprep.subr.bf16.mxu0 0
    %750 = vmatpush1.bf16.msra.mxu0 0
    %751 = vmatprep.subr.bf16.mxu0 0
    %752 = vmatpush1.bf16.msra.mxu0 0
    %753 = vmatprep.subr.bf16.mxu0 0
    %754 = vmatpush1.bf16.msra.mxu0 0
    %755 = vmatprep.subr.bf16.mxu0 0
    %756 = vmatpush1.bf16.msra.mxu0 0
    %757 = vmatprep.subr.bf16.mxu0 0
    %758 = vmatpush1.bf16.msra.mxu0 0
    %759 = vmatprep.mubr.bf16.mxu0 0
    %760 = vmatmul.mubr.bf16.gmra.mrb[0].mxu0 %v685
    %v761 = vpop.f32.mrb[0].mxu0
    %v762 = vadd.f32 0.0, %v761
    %v763 = vpop.f32.mrb[0].mxu0
    %v764 = vadd.f32 0.0, %v763
    %v765 = vpop.f32.mrb[0].mxu0
    %v766 = vpop.f32.mrb[0].mxu0
    %767 = vdwg.mxu0
    %v768 = vadd.f32 %v681, %v721
    %v769 = vadd.f32 %v682, %v723
    %v770 = vadd.f32 %v683, %v762
    %v771 = vadd.f32 %v684, %v764
    %v772 = vxor.u32 %v768, 2147483648
    %v773 = vmul.f32 %v772, 1.442695
    %v774 = vpow.pop %v773
    %v775 = vadd.f32 %v774, 1.0
    %v776 = vrcp.pop %v775
    %v777 = vmul.f32 1.0, %v776
    %v778 = vxor.u32 %v769, 2147483648
    %v779 = vmul.f32 %v778, 1.442695
    %v780 = vpow.pop %v779
    %v781 = vadd.f32 %v780, 1.0
    %v782 = vrcp.pop %v781
    %v783 = vmul.f32 1.0, %v782
    %v784 = vtanh.pop %v770
    %v785 = vxor.u32 %v771, 2147483648
    %v786 = vmul.f32 %v785, 1.442695
    %v787 = vpow.pop %v786
    %v788 = vadd.f32 %v787, 1.0
    %v789 = vrcp.pop %v788
    %v790 = vmul.f32 1.0, %v789
    %v791 = vmul.f32 %v783, %v675
    %v792 = vmul.f32 %v777, %v784
    %v793 = vadd.f32 %v791, %v792
    %v794 = vtanh.pop %v793
    %v795 = vmul.f32 %v790, %v794
    %s796 = smul.u32 2, 4
    %s797 = smul.addr %s796, 8
    %s798 = scalar_lea.vmem [#allocation2], %s797
    %v799 = vld [vmem:[%s798] sm:$0xff]
    %v800 = vld [vmem:[%s798 + $0x8] sm:$0xff]
    %v801 = vld [vmem:[%s798 + $0x10] sm:$0xff]
    %v802 = vld [vmem:[%s798 + $0x18] sm:$0xff]
    %v803 = vpack.c.bf16 %v795, %v795
    %804 = vmatprep.subr.bf16.mxu0 %v505
    %805 = vmatpush1.bf16.msra.mxu0 %v504
    %806 = vmatprep.subr.bf16.mxu0 %v509
    %807 = vmatpush1.bf16.msra.mxu0 %v508
    %808 = vmatprep.subr.bf16.mxu0 %v513
    %809 = vmatpush1.bf16.msra.mxu0 %v512
    %810 = vmatprep.subr.bf16.mxu0 %v517
    %811 = vmatpush1.bf16.msra.mxu0 %v516
    %812 = vmatprep.subr.bf16.mxu0 %v521
    %813 = vmatpush1.bf16.msra.mxu0 %v520
    %814 = vmatprep.subr.bf16.mxu0 %v525
    %815 = vmatpush1.bf16.msra.mxu0 %v524
    %816 = vmatprep.subr.bf16.mxu0 %v529
    %817 = vmatpush1.bf16.msra.mxu0 %v528
    %818 = vmatprep.subr.bf16.mxu0 %v533
    %819 = vmatpush1.bf16.msra.mxu0 %v532
    %820 = vmatprep.subr.bf16.mxu0 0
    %821 = vmatpush1.bf16.msra.mxu0 0
    %822 = vmatprep.subr.bf16.mxu0 0
    %823 = vmatpush1.bf16.msra.mxu0 0
    %824 = vmatprep.subr.bf16.mxu0 0
    %825 = vmatpush1.bf16.msra.mxu0 0
    %826 = vmatprep.subr.bf16.mxu0 0
    %827 = vmatpush1.bf16.msra.mxu0 0
    %828 = vmatprep.subr.bf16.mxu0 0
    %829 = vmatpush1.bf16.msra.mxu0 0
    %830 = vmatprep.subr.bf16.mxu0 0
    %831 = vmatpush1.bf16.msra.mxu0 0
    %832 = vmatprep.subr.bf16.mxu0 0
    %833 = vmatpush1.bf16.msra.mxu0 0
    %834 = vmatprep.subr.bf16.mxu0 0
    %835 = vmatpush1.bf16.msra.mxu0 0
    %836 = vmatprep.mubr.bf16.mxu0 0
    %837 = vmatmul.mubr.bf16.gmra.mrb[0].mxu0 %v803
    %v838 = vpop.f32.mrb[0].mxu0
    %v839 = vadd.f32 0.0, %v838
    %v840 = vpop.f32.mrb[0].mxu0
    %v841 = vadd.f32 0.0, %v840
    %v842 = vpop.f32.mrb[0].mxu0
    %v843 = vpop.f32.mrb[0].mxu0
    %844 = vdwg.mxu0
    %845 = vmatprep.subr.bf16.mxu0 %v507
    %846 = vmatpush1.bf16.msra.mxu0 %v506
    %847 = vmatprep.subr.bf16.mxu0 %v511
    %848 = vmatpush1.bf16.msra.mxu0 %v510
    %849 = vmatprep.subr.bf16.mxu0 %v515
    %850 = vmatpush1.bf16.msra.mxu0 %v514
    %851 = vmatprep.subr.bf16.mxu0 %v519
    %852 = vmatpush1.bf16.msra.mxu0 %v518
    %853 = vmatprep.subr.bf16.mxu0 %v523
    %854 = vmatpush1.bf16.msra.mxu0 %v522
    %855 = vmatprep.subr.bf16.mxu0 %v527
    %856 = vmatpush1.bf16.msra.mxu0 %v526
    %857 = vmatprep.subr.bf16.mxu0 %v531
    %858 = vmatpush1.bf16.msra.mxu0 %v530
    %859 = vmatprep.subr.bf16.mxu0 %v535
    %860 = vmatpush1.bf16.msra.mxu0 %v534
    %861 = vmatprep.subr.bf16.mxu0 0
    %862 = vmatpush1.bf16.msra.mxu0 0
    %863 = vmatprep.subr.bf16.mxu0 0
    %864 = vmatpush1.bf16.msra.mxu0 0
    %865 = vmatprep.subr.bf16.mxu0 0
    %866 = vmatpush1.bf16.msra.mxu0 0
    %867 = vmatprep.subr.bf16.mxu0 0
    %868 = vmatpush1.bf16.msra.mxu0 0
    %869 = vmatprep.subr.bf16.mxu0 0
    %870 = vmatpush1.bf16.msra.mxu0 0
    %871 = vmatprep.subr.bf16.mxu0 0
    %872 = vmatpush1.bf16.msra.mxu0 0
    %873 = vmatprep.subr.bf16.mxu0 0
    %874 = vmatpush1.bf16.msra.mxu0 0
    %875 = vmatprep.subr.bf16.mxu0 0
    %876 = vmatpush1.bf16.msra.mxu0 0
    %877 = vmatprep.mubr.bf16.mxu0 0
    %878 = vmatmul.mubr.bf16.gmra.mrb[0].mxu0 %v803
    %v879 = vpop.f32.mrb[0].mxu0
    %v880 = vadd.f32 0.0, %v879
    %v881 = vpop.f32.mrb[0].mxu0
    %v882 = vadd.f32 0.0, %v881
    %v883 = vpop.f32.mrb[0].mxu0
    %v884 = vpop.f32.mrb[0].mxu0
    %885 = vdwg.mxu0
    %v886 = vadd.f32 %v799, %v839
    %v887 = vadd.f32 %v800, %v841
    %v888 = vadd.f32 %v801, %v880
    %v889 = vadd.f32 %v802, %v882
    %v890 = vxor.u32 %v886, 2147483648
    %v891 = vmul.f32 %v890, 1.442695
    %v892 = vpow.pop %v891
    %v893 = vadd.f32 %v892, 1.0
    %v894 = vrcp.pop %v893
    %v895 = vmul.f32 1.0, %v894
    %v896 = vxor.u32 %v887, 2147483648
    %v897 = vmul.f32 %v896, 1.442695
    %v898 = vpow.pop %v897
    %v899 = vadd.f32 %v898, 1.0
    %v900 = vrcp.pop %v899
    %v901 = vmul.f32 1.0, %v900
    %v902 = vtanh.pop %v888
    %v903 = vxor.u32 %v889, 2147483648
    %v904 = vmul.f32 %v903, 1.442695
    %v905 = vpow.pop %v904
    %v906 = vadd.f32 %v905, 1.0
    %v907 = vrcp.pop %v906
    %v908 = vmul.f32 1.0, %v907
    %v909 = vmul.f32 %v901, %v793
    %v910 = vmul.f32 %v895, %v902
    %v911 = vadd.f32 %v909, %v910
    %v912 = vtanh.pop %v911
    %v913 = vmul.f32 %v908, %v912
    %s914 = smul.u32 3, 4
    %s915 = smul.addr %s914, 8
    %s916 = scalar_lea.vmem [#allocation2], %s915
    %v917 = vld [vmem:[%s916] sm:$0xff]
    %v918 = vld [vmem:[%s916 + $0x8] sm:$0xff]
    %v919 = vld [vmem:[%s916 + $0x10] sm:$0xff]
    %v920 = vld [vmem:[%s916 + $0x18] sm:$0xff]
    %v921 = vpack.c.bf16 %v913, %v913
    %922 = vmatprep.subr.bf16.mxu0 %v505
    %923 = vmatpush1.bf16.msra.mxu0 %v504
    %924 = vmatprep.subr.bf16.mxu0 %v509
    %925 = vmatpush1.bf16.msra.mxu0 %v508
    %926 = vmatprep.subr.bf16.mxu0 %v513
    %927 = vmatpush1.bf16.msra.mxu0 %v512
    %928 = vmatprep.subr.bf16.mxu0 %v517
    %929 = vmatpush1.bf16.msra.mxu0 %v516
    %930 = vmatprep.subr.bf16.mxu0 %v521
    %931 = vmatpush1.bf16.msra.mxu0 %v520
    %932 = vmatprep.subr.bf16.mxu0 %v525
    %933 = vmatpush1.bf16.msra.mxu0 %v524
    %934 = vmatprep.subr.bf16.mxu0 %v529
    %935 = vmatpush1.bf16.msra.mxu0 %v528
    %936 = vmatprep.subr.bf16.mxu0 %v533
    %937 = vmatpush1.bf16.msra.mxu0 %v532
    %938 = vmatprep.subr.bf16.mxu0 0
    %939 = vmatpush1.bf16.msra.mxu0 0
    %940 = vmatprep.subr.bf16.mxu0 0
    %941 = vmatpush1.bf16.msra.mxu0 0
    %942 = vmatprep.subr.bf16.mxu0 0
    %943 = vmatpush1.bf16.msra.mxu0 0
    %944 = vmatprep.subr.bf16.mxu0 0
    %945 = vmatpush1.bf16.msra.mxu0 0
    %946 = vmatprep.subr.bf16.mxu0 0
    %947 = vmatpush1.bf16.msra.mxu0 0
    %948 = vmatprep.subr.bf16.mxu0 0
    %949 = vmatpush1.bf16.msra.mxu0 0
    %950 = vmatprep.subr.bf16.mxu0 0
    %951 = vmatpush1.bf16.msra.mxu0 0
    %952 = vmatprep.subr.bf16.mxu0 0
    %953 = vmatpush1.bf16.msra.mxu0 0
    %954 = vmatprep.mubr.bf16.mxu0 0
    %955 = vmatmul.mubr.bf16.gmra.mrb[0].mxu0 %v921
    %v956 = vpop.f32.mrb[0].mxu0
    %v957 = vadd.f32 0.0, %v956
    %v958 = vpop.f32.mrb[0].mxu0
    %v959 = vadd.f32 0.0, %v958
    %v960 = vpop.f32.mrb[0].mxu0
    %v961 = vpop.f32.mrb[0].mxu0
    %962 = vdwg.mxu0
    %963 = vmatprep.subr.bf16.mxu0 %v507
    %964 = vmatpush1.bf16.msra.mxu0 %v506
    %965 = vmatprep.subr.bf16.mxu0 %v511
    %966 = vmatpush1.bf16.msra.mxu0 %v510
    %967 = vmatprep.subr.bf16.mxu0 %v515
    %968 = vmatpush1.bf16.msra.mxu0 %v514
    %969 = vmatprep.subr.bf16.mxu0 %v519
    %970 = vmatpush1.bf16.msra.mxu0 %v518
    %971 = vmatprep.subr.bf16.mxu0 %v523
    %972 = vmatpush1.bf16.msra.mxu0 %v522
    %973 = vmatprep.subr.bf16.mxu0 %v527
    %974 = vmatpush1.bf16.msra.mxu0 %v526
    %975 = vmatprep.subr.bf16.mxu0 %v531
    %976 = vmatpush1.bf16.msra.mxu0 %v530
    %977 = vmatprep.subr.bf16.mxu0 %v535
    %978 = vmatpush1.bf16.msra.mxu0 %v534
    %979 = vmatprep.subr.bf16.mxu0 0
    %980 = vmatpush1.bf16.msra.mxu0 0
    %981 = vmatprep.subr.bf16.mxu0 0
    %982 = vmatpush1.bf16.msra.mxu0 0
    %983 = vmatprep.subr.bf16.mxu0 0
    %984 = vmatpush1.bf16.msra.mxu0 0
    %985 = vmatprep.subr.bf16.mxu0 0
    %986 = vmatpush1.bf16.msra.mxu0 0
    %987 = vmatprep.subr.bf16.mxu0 0
    %988 = vmatpush1.bf16.msra.mxu0 0
    %989 = vmatprep.subr.bf16.mxu0 0
    %990 = vmatpush1.bf16.msra.mxu0 0
    %991 = vmatprep.subr.bf16.mxu0 0
    %992 = vmatpush1.bf16.msra.mxu0 0
    %993 = vmatprep.subr.bf16.mxu0 0
    %994 = vmatpush1.bf16.msra.mxu0 0
    %995 = vmatprep.mubr.bf16.mxu0 0
    %996 = vmatmul.mubr.bf16.gmra.mrb[0].mxu0 %v921
    %v997 = vpop.f32.mrb[0].mxu0
    %v998 = vadd.f32 0.0, %v997
    %v999 = vpop.f32.mrb[0].mxu0
    %v1000 = vadd.f32 0.0, %v999
    %v1001 = vpop.f32.mrb[0].mxu0
    %v1002 = vpop.f32.mrb[0].mxu0
    %1003 = vdwg.mxu0
    %v1004 = vadd.f32 %v917, %v957
    %v1005 = vadd.f32 %v918, %v959
    %v1006 = vadd.f32 %v919, %v998
    %v1007 = vadd.f32 %v920, %v1000
    %v1008 = vxor.u32 %v1004, 2147483648
    %v1009 = vmul.f32 %v1008, 1.442695
    %v1010 = vpow.pop %v1009
    %v1011 = vadd.f32 %v1010, 1.0
    %v1012 = vrcp.pop %v1011
    %v1013 = vmul.f32 1.0, %v1012
    %v1014 = vxor.u32 %v1005, 2147483648
    %v1015 = vmul.f32 %v1014, 1.442695
    %v1016 = vpow.pop %v1015
    %v1017 = vadd.f32 %v1016, 1.0
    %v1018 = vrcp.pop %v1017
    %v1019 = vmul.f32 1.0, %v1018
    %v1020 = vtanh.pop %v1006
    %v1021 = vxor.u32 %v1007, 2147483648
    %v1022 = vmul.f32 %v1021, 1.442695
    %v1023 = vpow.pop %v1022
    %v1024 = vadd.f32 %v1023, 1.0
    %v1025 = vrcp.pop %v1024
    %v1026 = vmul.f32 1.0, %v1025
    %v1027 = vmul.f32 %v1019, %v911
    %v1028 = vmul.f32 %v1013, %v1020
    %v1029 = vadd.f32 %v1027, %v1028
    %v1030 = vtanh.pop %v1029
    %v1031 = vmul.f32 %v1026, %v1030
    %s1032 = smul.u32 4, 4
    %s1033 = smul.addr %s1032, 8
    %s1034 = scalar_lea.vmem [#allocation2], %s1033
    %v1035 = vld [vmem:[%s1034] sm:$0xff]
    %v1036 = vld [vmem:[%s1034 + $0x8] sm:$0xff]
    %v1037 = vld [vmem:[%s1034 + $0x10] sm:$0xff]
    %v1038 = vld [vmem:[%s1034 + $0x18] sm:$0xff]
    %v1039 = vpack.c.bf16 %v1031, %v1031
    %1040 = vmatprep.subr.bf16.mxu0 %v505
    %1041 = vmatpush1.bf16.msra.mxu0 %v504
    %1042 = vmatprep.subr.bf16.mxu0 %v509
    %1043 = vmatpush1.bf16.msra.mxu0 %v508
    %1044 = vmatprep.subr.bf16.mxu0 %v513
    %1045 = vmatpush1.bf16.msra.mxu0 %v512
    %1046 = vmatprep.subr.bf16.mxu0 %v517
    %1047 = vmatpush1.bf16.msra.mxu0 %v516
    %1048 = vmatprep.subr.bf16.mxu0 %v521
    %1049 = vmatpush1.bf16.msra.mxu0 %v520
    %1050 = vmatprep.subr.bf16.mxu0 %v525
    %1051 = vmatpush1.bf16.msra.mxu0 %v524
    %1052 = vmatprep.subr.bf16.mxu0 %v529
    %1053 = vmatpush1.bf16.msra.mxu0 %v528
    %1054 = vmatprep.subr.bf16.mxu0 %v533
    %1055 = vmatpush1.bf16.msra.mxu0 %v532
    %1056 = vmatprep.subr.bf16.mxu0 0
    %1057 = vmatpush1.bf16.msra.mxu0 0
    %1058 = vmatprep.subr.bf16.mxu0 0
    %1059 = vmatpush1.bf16.msra.mxu0 0
    %1060 = vmatprep.subr.bf16.mxu0 0
    %1061 = vmatpush1.bf16.msra.mxu0 0
    %1062 = vmatprep.subr.bf16.mxu0 0
    %1063 = vmatpush1.bf16.msra.mxu0 0
    %1064 = vmatprep.subr.bf16.mxu0 0
    %1065 = vmatpush1.bf16.msra.mxu0 0
    %1066 = vmatprep.subr.bf16.mxu0 0
    %1067 = vmatpush1.bf16.msra.mxu0 0
    %1068 = vmatprep.subr.bf16.mxu0 0
    %1069 = vmatpush1.bf16.msra.mxu0 0
    %1070 = vmatprep.subr.bf16.mxu0 0
    %1071 = vmatpush1.bf16.msra.mxu0 0
    %1072 = vmatprep.mubr.bf16.mxu0 0
    %1073 = vmatmul.mubr.bf16.gmra.mrb[0].mxu0 %v1039
    %v1074 = vpop.f32.mrb[0].mxu0
    %v1075 = vadd.f32 0.0, %v1074
    %v1076 = vpop.f32.mrb[0].mxu0
    %v1077 = vadd.f32 0.0, %v1076
    %v1078 = vpop.f32.mrb[0].mxu0
    %v1079 = vpop.f32.mrb[0].mxu0
    %1080 = vdwg.mxu0
    %1081 = vmatprep.subr.bf16.mxu0 %v507
    %1082 = vmatpush1.bf16.msra.mxu0 %v506
    %1083 = vmatprep.subr.bf16.mxu0 %v511
    %1084 = vmatpush1.bf16.msra.mxu0 %v510
    %1085 = vmatprep.subr.bf16.mxu0 %v515
    %1086 = vmatpush1.bf16.msra.mxu0 %v514
    %1087 = vmatprep.subr.bf16.mxu0 %v519
    %1088 = vmatpush1.bf16.msra.mxu0 %v518
    %1089 = vmatprep.subr.bf16.mxu0 %v523
    %1090 = vmatpush1.bf16.msra.mxu0 %v522
    %1091 = vmatprep.subr.bf16.mxu0 %v527
    %1092 = vmatpush1.bf16.msra.mxu0 %v526
    %1093 = vmatprep.subr.bf16.mxu0 %v531
    %1094 = vmatpush1.bf16.msra.mxu0 %v530
    %1095 = vmatprep.subr.bf16.mxu0 %v535
    %1096 = vmatpush1.bf16.msra.mxu0 %v534
    %1097 = vmatprep.subr.bf16.mxu0 0
    %1098 = vmatpush1.bf16.msra.mxu0 0
    %1099 = vmatprep.subr.bf16.mxu0 0
    %1100 = vmatpush1.bf16.msra.mxu0 0
    %1101 = vmatprep.subr.bf16.mxu0 0
    %1102 = vmatpush1.bf16.msra.mxu0 0
    %1103 = vmatprep.subr.bf16.mxu0 0
    %1104 = vmatpush1.bf16.msra.mxu0 0
    %1105 = vmatprep.subr.bf16.mxu0 0
    %1106 = vmatpush1.bf16.msra.mxu0 0
    %1107 = vmatprep.subr.bf16.mxu0 0
    %1108 = vmatpush1.bf16.msra.mxu0 0
    %1109 = vmatprep.subr.bf16.mxu0 0
    %1110 = vmatpush1.bf16.msra.mxu0 0
    %1111 = vmatprep.subr.bf16.mxu0 0
    %1112 = vmatpush1.bf16.msra.mxu0 0
    %1113 = vmatprep.mubr.bf16.mxu0 0
    %1114 = vmatmul.mubr.bf16.gmra.mrb[0].mxu0 %v1039
    %v1115 = vpop.f32.mrb[0].mxu0
    %v1116 = vadd.f32 0.0, %v1115
    %v1117 = vpop.f32.mrb[0].mxu0
    %v1118 = vadd.f32 0.0, %v1117
    %v1119 = vpop.f32.mrb[0].mxu0
    %v1120 = vpop.f32.mrb[0].mxu0
    %1121 = vdwg.mxu0
    %v1122 = vadd.f32 %v1035, %v1075
    %v1123 = vadd.f32 %v1036, %v1077
    %v1124 = vadd.f32 %v1037, %v1116
    %v1125 = vadd.f32 %v1038, %v1118
    %v1126 = vxor.u32 %v1122, 2147483648
    %v1127 = vmul.f32 %v1126, 1.442695
    %v1128 = vpow.pop %v1127
    %v1129 = vadd.f32 %v1128, 1.0
    %v1130 = vrcp.pop %v1129
    %v1131 = vmul.f32 1.0, %v1130
    %v1132 = vxor.u32 %v1123, 2147483648
    %v1133 = vmul.f32 %v1132, 1.442695
    %v1134 = vpow.pop %v1133
    %v1135 = vadd.f32 %v1134, 1.0
    %v1136 = vrcp.pop %v1135
    %v1137 = vmul.f32 1.0, %v1136
    %v1138 = vtanh.pop %v1124
    %v1139 = vxor.u32 %v1125, 2147483648
    %v1140 = vmul.f32 %v1139, 1.442695
    %v1141 = vpow.pop %v1140
    %v1142 = vadd.f32 %v1141, 1.0
    %v1143 = vrcp.pop %v1142
    %v1144 = vmul.f32 1.0, %v1143
    %v1145 = vmul.f32 %v1137, %v1029
    %v1146 = vmul.f32 %v1131, %v1138
    %v1147 = vadd.f32 %v1145, %v1146
    %v1148 = vtanh.pop %v1147
    %v1149 = vmul.f32 %v1144, %v1148
    %s1150 = smul.u32 5, 4
    %s1151 = smul.addr %s1150, 8
    %s1152 = scalar_lea.vmem [#allocation2], %s1151
    %v1153 = vld [vmem:[%s1152] sm:$0xff]
    %v1154 = vld [vmem:[%s1152 + $0x8] sm:$0xff]
    %v1155 = vld [vmem:[%s1152 + $0x10] sm:$0xff]
    %v1156 = vld [vmem:[%s1152 + $0x18] sm:$0xff]
    %v1157 = vpack.c.bf16 %v1149, %v1149
    %1158 = vmatprep.subr.bf16.mxu0 %v505
    %1159 = vmatpush1.bf16.msra.mxu0 %v504
    %1160 = vmatprep.subr.bf16.mxu0 %v509
    %1161 = vmatpush1.bf16.msra.mxu0 %v508
    %1162 = vmatprep.subr.bf16.mxu0 %v513
    %1163 = vmatpush1.bf16.msra.mxu0 %v512
    %1164 = vmatprep.subr.bf16.mxu0 %v517
    %1165 = vmatpush1.bf16.msra.mxu0 %v516
    %1166 = vmatprep.subr.bf16.mxu0 %v521
    %1167 = vmatpush1.bf16.msra.mxu0 %v520
    %1168 = vmatprep.subr.bf16.mxu0 %v525
    %1169 = vmatpush1.bf16.msra.mxu0 %v524
    %1170 = vmatprep.subr.bf16.mxu0 %v529
    %1171 = vmatpush1.bf16.msra.mxu0 %v528
    %1172 = vmatprep.subr.bf16.mxu0 %v533
    %1173 = vmatpush1.bf16.msra.mxu0 %v532
    %1174 = vmatprep.subr.bf16.mxu0 0
    %1175 = vmatpush1.bf16.msra.mxu0 0
    %1176 = vmatprep.subr.bf16.mxu0 0
    %1177 = vmatpush1.bf16.msra.mxu0 0
    %1178 = vmatprep.subr.bf16.mxu0 0
    %1179 = vmatpush1.bf16.msra.mxu0 0
    %1180 = vmatprep.subr.bf16.mxu0 0
    %1181 = vmatpush1.bf16.msra.mxu0 0
    %1182 = vmatprep.subr.bf16.mxu0 0
    %1183 = vmatpush1.bf16.msra.mxu0 0
    %1184 = vmatprep.subr.bf16.mxu0 0
    %1185 = vmatpush1.bf16.msra.mxu0 0
    %1186 = vmatprep.subr.bf16.mxu0 0
    %1187 = vmatpush1.bf16.msra.mxu0 0
    %1188 = vmatprep.subr.bf16.mxu0 0
    %1189 = vmatpush1.bf16.msra.mxu0 0
    %1190 = vmatprep.mubr.bf16.mxu0 0
    %1191 = vmatmul.mubr.bf16.gmra.mrb[0].mxu0 %v1157
    %v1192 = vpop.f32.mrb[0].mxu0
    %v1193 = vadd.f32 0.0, %v1192
    %v1194 = vpop.f32.mrb[0].mxu0
    %v1195 = vadd.f32 0.0, %v1194
    %v1196 = vpop.f32.mrb[0].mxu0
    %v1197 = vpop.f32.mrb[0].mxu0
    %1198 = vdwg.mxu0
    %1199 = vmatprep.subr.bf16.mxu0 %v507
    %1200 = vmatpush1.bf16.msra.mxu0 %v506
    %1201 = vmatprep.subr.bf16.mxu0 %v511
    %1202 = vmatpush1.bf16.msra.mxu0 %v510
    %1203 = vmatprep.subr.bf16.mxu0 %v515
    %1204 = vmatpush1.bf16.msra.mxu0 %v514
    %1205 = vmatprep.subr.bf16.mxu0 %v519
    %1206 = vmatpush1.bf16.msra.mxu0 %v518
    %1207 = vmatprep.subr.bf16.mxu0 %v523
    %1208 = vmatpush1.bf16.msra.mxu0 %v522
    %1209 = vmatprep.subr.bf16.mxu0 %v527
    %1210 = vmatpush1.bf16.msra.mxu0 %v526
    %1211 = vmatprep.subr.bf16.mxu0 %v531
    %1212 = vmatpush1.bf16.msra.mxu0 %v530
    %1213 = vmatprep.subr.bf16.mxu0 %v535
    %1214 = vmatpush1.bf16.msra.mxu0 %v534
    %1215 = vmatprep.subr.bf16.mxu0 0
    %1216 = vmatpush1.bf16.msra.mxu0 0
    %1217 = vmatprep.subr.bf16.mxu0 0
    %1218 = vmatpush1.bf16.msra.mxu0 0
    %1219 = vmatprep.subr.bf16.mxu0 0
    %1220 = vmatpush1.bf16.msra.mxu0 0
    %1221 = vmatprep.subr.bf16.mxu0 0
    %1222 = vmatpush1.bf16.msra.mxu0 0
    %1223 = vmatprep.subr.bf16.mxu0 0
    %1224 = vmatpush1.bf16.msra.mxu0 0
    %1225 = vmatprep.subr.bf16.mxu0 0
    %1226 = vmatpush1.bf16.msra.mxu0 0
    %1227 = vmatprep.subr.bf16.mxu0 0
    %1228 = vmatpush1.bf16.msra.mxu0 0
    %1229 = vmatprep.subr.bf16.mxu0 0
    %1230 = vmatpush1.bf16.msra.mxu0 0
    %1231 = vmatprep.mubr.bf16.mxu0 0
    %1232 = vmatmul.mubr.bf16.gmra.mrb[0].mxu0 %v1157
    %v1233 = vpop.f32.mrb[0].mxu0
    %v1234 = vadd.f32 0.0, %v1233
    %v1235 = vpop.f32.mrb[0].mxu0
    %v1236 = vadd.f32 0.0, %v1235
    %v1237 = vpop.f32.mrb[0].mxu0
    %v1238 = vpop.f32.mrb[0].mxu0
    %1239 = vdwg.mxu0
    %v1240 = vadd.f32 %v1153, %v1193
    %v1241 = vadd.f32 %v1154, %v1195
    %v1242 = vadd.f32 %v1155, %v1234
    %v1243 = vadd.f32 %v1156, %v1236
    %v1244 = vxor.u32 %v1240, 2147483648
    %v1245 = vmul.f32 %v1244, 1.442695
    %v1246 = vpow.pop %v1245
    %v1247 = vadd.f32 %v1246, 1.0
    %v1248 = vrcp.pop %v1247
    %v1249 = vmul.f32 1.0, %v1248
    %v1250 = vxor.u32 %v1241, 2147483648
    %v1251 = vmul.f32 %v1250, 1.442695
    %v1252 = vpow.pop %v1251
    %v1253 = vadd.f32 %v1252, 1.0
    %v1254 = vrcp.pop %v1253
    %v1255 = vmul.f32 1.0, %v1254
    %v1256 = vtanh.pop %v1242
    %v1257 = vxor.u32 %v1243, 2147483648
    %v1258 = vmul.f32 %v1257, 1.442695
    %v1259 = vpow.pop %v1258
    %v1260 = vadd.f32 %v1259, 1.0
    %v1261 = vrcp.pop %v1260
    %v1262 = vmul.f32 1.0, %v1261
    %v1263 = vmul.f32 %v1255, %v1147
    %v1264 = vmul.f32 %v1249, %v1256
    %v1265 = vadd.f32 %v1263, %v1264
    %v1266 = vtanh.pop %v1265
    %v1267 = vmul.f32 %v1262, %v1266
    %s1268 = smul.u32 6, 4
    %s1269 = smul.addr %s1268, 8
    %s1270 = scalar_lea.vmem [#allocation2], %s1269
    %v1271 = vld [vmem:[%s1270] sm:$0xff]
    %v1272 = vld [vmem:[%s1270 + $0x8] sm:$0xff]
    %v1273 = vld [vmem:[%s1270 + $0x10] sm:$0xff]
    %v1274 = vld [vmem:[%s1270 + $0x18] sm:$0xff]
    %v1275 = vpack.c.bf16 %v1267, %v1267
    %1276 = vmatprep.subr.bf16.mxu0 %v505
    %1277 = vmatpush1.bf16.msra.mxu0 %v504
    %1278 = vmatprep.subr.bf16.mxu0 %v509
    %1279 = vmatpush1.bf16.msra.mxu0 %v508
    %1280 = vmatprep.subr.bf16.mxu0 %v513
    %1281 = vmatpush1.bf16.msra.mxu0 %v512
    %1282 = vmatprep.subr.bf16.mxu0 %v517
    %1283 = vmatpush1.bf16.msra.mxu0 %v516
    %1284 = vmatprep.subr.bf16.mxu0 %v521
    %1285 = vmatpush1.bf16.msra.mxu0 %v520
    %1286 = vmatprep.subr.bf16.mxu0 %v525
    %1287 = vmatpush1.bf16.msra.mxu0 %v524
    %1288 = vmatprep.subr.bf16.mxu0 %v529
    %1289 = vmatpush1.bf16.msra.mxu0 %v528
    %1290 = vmatprep.subr.bf16.mxu0 %v533
    %1291 = vmatpush1.bf16.msra.mxu0 %v532
    %1292 = vmatprep.subr.bf16.mxu0 0
    %1293 = vmatpush1.bf16.msra.mxu0 0
    %1294 = vmatprep.subr.bf16.mxu0 0
    %1295 = vmatpush1.bf16.msra.mxu0 0
    %1296 = vmatprep.subr.bf16.mxu0 0
    %1297 = vmatpush1.bf16.msra.mxu0 0
    %1298 = vmatprep.subr.bf16.mxu0 0
    %1299 = vmatpush1.bf16.msra.mxu0 0
    %1300 = vmatprep.subr.bf16.mxu0 0
    %1301 = vmatpush1.bf16.msra.mxu0 0
    %1302 = vmatprep.subr.bf16.mxu0 0
    %1303 = vmatpush1.bf16.msra.mxu0 0
    %1304 = vmatprep.subr.bf16.mxu0 0
    %1305 = vmatpush1.bf16.msra.mxu0 0
    %1306 = vmatprep.subr.bf16.mxu0 0
    %1307 = vmatpush1.bf16.msra.mxu0 0
    %1308 = vmatprep.mubr.bf16.mxu0 0
    %1309 = vmatmul.mubr.bf16.gmra.mrb[0].mxu0 %v1275
    %v1310 = vpop.f32.mrb[0].mxu0
    %v1311 = vadd.f32 0.0, %v1310
    %v1312 = vpop.f32.mrb[0].mxu0
    %v1313 = vadd.f32 0.0, %v1312
    %v1314 = vpop.f32.mrb[0].mxu0
    %v1315 = vpop.f32.mrb[0].mxu0
    %1316 = vdwg.mxu0
    %1317 = vmatprep.subr.bf16.mxu0 %v507
    %1318 = vmatpush1.bf16.msra.mxu0 %v506
    %1319 = vmatprep.subr.bf16.mxu0 %v511
    %1320 = vmatpush1.bf16.msra.mxu0 %v510
    %1321 = vmatprep.subr.bf16.mxu0 %v515
    %1322 = vmatpush1.bf16.msra.mxu0 %v514
    %1323 = vmatprep.subr.bf16.mxu0 %v519
    %1324 = vmatpush1.bf16.msra.mxu0 %v518
    %1325 = vmatprep.subr.bf16.mxu0 %v523
    %1326 = vmatpush1.bf16.msra.mxu0 %v522
    %1327 = vmatprep.subr.bf16.mxu0 %v527
    %1328 = vmatpush1.bf16.msra.mxu0 %v526
    %1329 = vmatprep.subr.bf16.mxu0 %v531
    %1330 = vmatpush1.bf16.msra.mxu0 %v530
    %1331 = vmatprep.subr.bf16.mxu0 %v535
    %1332 = vmatpush1.bf16.msra.mxu0 %v534
    %1333 = vmatprep.subr.bf16.mxu0 0
    %1334 = vmatpush1.bf16.msra.mxu0 0
    %1335 = vmatprep.subr.bf16.mxu0 0
    %1336 = vmatpush1.bf16.msra.mxu0 0
    %1337 = vmatprep.subr.bf16.mxu0 0
    %1338 = vmatpush1.bf16.msra.mxu0 0
    %1339 = vmatprep.subr.bf16.mxu0 0
    %1340 = vmatpush1.bf16.msra.mxu0 0
    %1341 = vmatprep.subr.bf16.mxu0 0
    %1342 = vmatpush1.bf16.msra.mxu0 0
    %1343 = vmatprep.subr.bf16.mxu0 0
    %1344 = vmatpush1.bf16.msra.mxu0 0
    %1345 = vmatprep.subr.bf16.mxu0 0
    %1346 = vmatpush1.bf16.msra.mxu0 0
    %1347 = vmatprep.subr.bf16.mxu0 0
    %1348 = vmatpush1.bf16.msra.mxu0 0
    %1349 = vmatprep.mubr.bf16.mxu0 0
    %1350 = vmatmul.mubr.bf16.gmra.mrb[0].mxu0 %v1275
    %v1351 = vpop.f32.mrb[0].mxu0
    %v1352 = vadd.f32 0.0, %v1351
    %v1353 = vpop.f32.mrb[0].mxu0
    %v1354 = vadd.f32 0.0, %v1353
    %v1355 = vpop.f32.mrb[0].mxu0
    %v1356 = vpop.f32.mrb[0].mxu0
    %1357 = vdwg.mxu0
    %v1358 = vadd.f32 %v1271, %v1311
    %v1359 = vadd.f32 %v1272, %v1313
    %v1360 = vadd.f32 %v1273, %v1352
    %v1361 = vadd.f32 %v1274, %v1354
    %v1362 = vxor.u32 %v1358, 2147483648
    %v1363 = vmul.f32 %v1362, 1.442695
    %v1364 = vpow.pop %v1363
    %v1365 = vadd.f32 %v1364, 1.0
    %v1366 = vrcp.pop %v1365
    %v1367 = vmul.f32 1.0, %v1366
    %v1368 = vxor.u32 %v1359, 2147483648
    %v1369 = vmul.f32 %v1368, 1.442695
    %v1370 = vpow.pop %v1369
    %v1371 = vadd.f32 %v1370, 1.0
    %v1372 = vrcp.pop %v1371
    %v1373 = vmul.f32 1.0, %v1372
    %v1374 = vtanh.pop %v1360
    %v1375 = vxor.u32 %v1361, 2147483648
    %v1376 = vmul.f32 %v1375, 1.442695
    %v1377 = vpow.pop %v1376
    %v1378 = vadd.f32 %v1377, 1.0
    %v1379 = vrcp.pop %v1378
    %v1380 = vmul.f32 1.0, %v1379
    %v1381 = vmul.f32 %v1373, %v1265
    %v1382 = vmul.f32 %v1367, %v1374
    %v1383 = vadd.f32 %v1381, %v1382
    %v1384 = vtanh.pop %v1383
    %v1385 = vmul.f32 %v1380, %v1384
    %s1386 = smul.u32 7, 4
    %s1387 = smul.addr %s1386, 8
    %s1388 = scalar_lea.vmem [#allocation2], %s1387
    %v1389 = vld [vmem:[%s1388] sm:$0xff]
    %v1390 = vld [vmem:[%s1388 + $0x8] sm:$0xff]
    %v1391 = vld [vmem:[%s1388 + $0x10] sm:$0xff]
    %v1392 = vld [vmem:[%s1388 + $0x18] sm:$0xff]
    %v1393 = vpack.c.bf16 %v1385, %v1385
    %1394 = vmatprep.subr.bf16.mxu0 %v505
    %1395 = vmatpush1.bf16.msra.mxu0 %v504
    %1396 = vmatprep.subr.bf16.mxu0 %v509
    %1397 = vmatpush1.bf16.msra.mxu0 %v508
    %1398 = vmatprep.subr.bf16.mxu0 %v513
    %1399 = vmatpush1.bf16.msra.mxu0 %v512
    %1400 = vmatprep.subr.bf16.mxu0 %v517
    %1401 = vmatpush1.bf16.msra.mxu0 %v516
    %1402 = vmatprep.subr.bf16.mxu0 %v521
    %1403 = vmatpush1.bf16.msra.mxu0 %v520
    %1404 = vmatprep.subr.bf16.mxu0 %v525
    %1405 = vmatpush1.bf16.msra.mxu0 %v524
    %1406 = vmatprep.subr.bf16.mxu0 %v529
    %1407 = vmatpush1.bf16.msra.mxu0 %v528
    %1408 = vmatprep.subr.bf16.mxu0 %v533
    %1409 = vmatpush1.bf16.msra.mxu0 %v532
    %1410 = vmatprep.subr.bf16.mxu0 0
    %1411 = vmatpush1.bf16.msra.mxu0 0
    %1412 = vmatprep.subr.bf16.mxu0 0
    %1413 = vmatpush1.bf16.msra.mxu0 0
    %1414 = vmatprep.subr.bf16.mxu0 0
    %1415 = vmatpush1.bf16.msra.mxu0 0
    %1416 = vmatprep.subr.bf16.mxu0 0
    %1417 = vmatpush1.bf16.msra.mxu0 0
    %1418 = vmatprep.subr.bf16.mxu0 0
    %1419 = vmatpush1.bf16.msra.mxu0 0
    %1420 = vmatprep.subr.bf16.mxu0 0
    %1421 = vmatpush1.bf16.msra.mxu0 0
    %1422 = vmatprep.subr.bf16.mxu0 0
    %1423 = vmatpush1.bf16.msra.mxu0 0
    %1424 = vmatprep.subr.bf16.mxu0 0
    %1425 = vmatpush1.bf16.msra.mxu0 0
    %1426 = vmatprep.mubr.bf16.mxu0 0
    %1427 = vmatmul.mubr.bf16.gmra.mrb[0].mxu0 %v1393
    %v1428 = vpop.f32.mrb[0].mxu0
    %v1429 = vadd.f32 0.0, %v1428
    %v1430 = vpop.f32.mrb[0].mxu0
    %v1431 = vadd.f32 0.0, %v1430
    %v1432 = vpop.f32.mrb[0].mxu0
    %v1433 = vpop.f32.mrb[0].mxu0
    %1434 = vdwg.mxu0
    %1435 = vmatprep.subr.bf16.mxu0 %v507
    %1436 = vmatpush1.bf16.msra.mxu0 %v506
    %1437 = vmatprep.subr.bf16.mxu0 %v511
    %1438 = vmatpush1.bf16.msra.mxu0 %v510
    %1439 = vmatprep.subr.bf16.mxu0 %v515
    %1440 = vmatpush1.bf16.msra.mxu0 %v514
    %1441 = vmatprep.subr.bf16.mxu0 %v519
    %1442 = vmatpush1.bf16.msra.mxu0 %v518
    %1443 = vmatprep.subr.bf16.mxu0 %v523
    %1444 = vmatpush1.bf16.msra.mxu0 %v522
    %1445 = vmatprep.subr.bf16.mxu0 %v527
    %1446 = vmatpush1.bf16.msra.mxu0 %v526
    %1447 = vmatprep.subr.bf16.mxu0 %v531
    %1448 = vmatpush1.bf16.msra.mxu0 %v530
    %1449 = vmatprep.subr.bf16.mxu0 %v535
    %1450 = vmatpush1.bf16.msra.mxu0 %v534
    %1451 = vmatprep.subr.bf16.mxu0 0
    %1452 = vmatpush1.bf16.msra.mxu0 0
    %1453 = vmatprep.subr.bf16.mxu0 0
    %1454 = vmatpush1.bf16.msra.mxu0 0
    %1455 = vmatprep.subr.bf16.mxu0 0
    %1456 = vmatpush1.bf16.msra.mxu0 0
    %1457 = vmatprep.subr.bf16.mxu0 0
    %1458 = vmatpush1.bf16.msra.mxu0 0
    %1459 = vmatprep.subr.bf16.mxu0 0
    %1460 = vmatpush1.bf16.msra.mxu0 0
    %1461 = vmatprep.subr.bf16.mxu0 0
    %1462 = vmatpush1.bf16.msra.mxu0 0
    %1463 = vmatprep.subr.bf16.mxu0 0
    %1464 = vmatpush1.bf16.msra.mxu0 0
    %1465 = vmatprep.subr.bf16.mxu0 0
    %1466 = vmatpush1.bf16.msra.mxu0 0
    %1467 = vmatprep.mubr.bf16.mxu0 0
    %1468 = vmatmul.mubr.bf16.gmra.mrb[0].mxu0 %v1393
    %v1469 = vpop.f32.mrb[0].mxu0
    %v1470 = vadd.f32 0.0, %v1469
    %v1471 = vpop.f32.mrb[0].mxu0
    %v1472 = vadd.f32 0.0, %v1471
    %v1473 = vpop.f32.mrb[0].mxu0
    %v1474 = vpop.f32.mrb[0].mxu0
    %1475 = vdwg.mxu0
    %v1476 = vadd.f32 %v1389, %v1429
    %v1477 = vadd.f32 %v1390, %v1431
    %v1478 = vadd.f32 %v1391, %v1470
    %v1479 = vadd.f32 %v1392, %v1472
    %v1480 = vxor.u32 %v1476, 2147483648
    %v1481 = vmul.f32 %v1480, 1.442695
    %v1482 = vpow.pop %v1481
    %v1483 = vadd.f32 %v1482, 1.0
    %v1484 = vrcp.pop %v1483
    %v1485 = vmul.f32 1.0, %v1484
    %v1486 = vxor.u32 %v1477, 2147483648
    %v1487 = vmul.f32 %v1486, 1.442695
    %v1488 = vpow.pop %v1487
    %v1489 = vadd.f32 %v1488, 1.0
    %v1490 = vrcp.pop %v1489
    %v1491 = vmul.f32 1.0, %v1490
    %v1492 = vtanh.pop %v1478
    %v1493 = vxor.u32 %v1479, 2147483648
    %v1494 = vmul.f32 %v1493, 1.442695
    %v1495 = vpow.pop %v1494
    %v1496 = vadd.f32 %v1495, 1.0
    %v1497 = vrcp.pop %v1496
    %v1498 = vmul.f32 1.0, %v1497
    %v1499 = vmul.f32 %v1491, %v1383
    %v1500 = vmul.f32 %v1485, %v1492
    %v1501 = vadd.f32 %v1499, %v1500
    %v1502 = vtanh.pop %v1501
    %v1503 = vmul.f32 %v1498, %v1502
    %v1504 = vld [vmem:[%s4] sm:$0x1]
    %v1506 = vlaneseq
    %v1507 = vshrl.u32 %v1506, 7
    %v1508 = vsub.s32 0, %v1507
    %v1509 = vrot.slane %v1504, %v1508
    %v1511 = vmul.f32 %v1503, %v1509
    %1512 = vadd.xlane.f32.xlu0 %v1511
    %v1513 = vpop.xlane.xlu0 %1512
    %s1514 = sld [smem:[#allocation3]]
    %v1515 = vstv %s1514
    %v1516 = vadd.f32 %v1513, %v1515
    %vm1517 = vcmask 7168
    %1518 = vst.msk [vmem:[%s6] sm:$0xff] %vm1517, %v1516
    // Predicated region
    $region30: #{tpu_custom_call.1} parent=1 // pred_check
      _
    $region31: #{tpu_custom_call.1} parent=1 // pred_check_branch
      %1520 = sbr.rel (0) target = $region33
    $region32: #{tpu_custom_call.1} parent=1 // pred_region
      _
    $region33: #{tpu_custom_call.1} parent=1 // pred_fallthru
      _
    // Predicated region
    $region34: #{tpu_custom_call.1} parent=1 // pred_check
      _
    $region35: #{tpu_custom_call.1} parent=1 // pred_check_branch
      %1522 = sbr.rel (0) target = $region37
    $region36: #{tpu_custom_call.1} parent=1 // pred_region
      _
    $region37: #{tpu_custom_call.1} parent=1 // pred_fallthru
      _
    %1523 = vsyncpa [#allocation5], 1

</llo_original>
